<compile_context>
chip_gen: v6e
topology: v6e:2x2x1
jax: 0.10.0
libtpu: 0.0.40
codegen_flags: <defaults>
</compile_context>

<pallas_src>
import functools
import math

import jax
import jax.numpy as jnp
import numpy as np
from jax.experimental import pallas as pl
from jax.experimental.pallas import tpu as pltpu

# ---- synthetic cfg (cfg.MODEL.DLA.* / cfg.MODEL.CENTERNET.*) ----------------
CHANNELS = [4, 8, 16, 32, 64, 128]   # per-level DLA channels (tiny, synthetic)
DOWN_RATIO = 4
LAST_LEVEL = 5
OUT_CHANNEL = 0
FIRST_LEVEL = int(np.log2(DOWN_RATIO))   # == 2
BN_EPS = 1e-5

# Explicit VMEM budget (fits v5e/v6e/v7x scoped limits).
_VMEM_LIMIT = 32 * 1024 * 1024


# ============================= Pallas kernels ================================

def _proj_up_kernel(x_ref, w_ref, s_ref, pw_ref, out_ref,
                    padin_ref, patch_ref, pady_ref, *, H, W, Cin, f):
    """Fused proj DeformConv (folded 0.5*mask + eval-BN + ReLU) + bilinear
    depthwise transposed-conv upsample expressed as f*f 4-tap phases.

    x:   (1, H, W, Cin)          one batch image
    w:   (9*Cin, Cout)           folded conv weight  (w * 0.5 * bn_scale)
    s:   (1, Cout)               folded shift        (b*scale + beta - mean*scale)
    pw:  (f*f*4, Cout)           per-phase 4-tap up-conv weights
    out: (1, f, f, H, W, Cout)   phase-major upsampled output
    scratch: padin (H+2, W+2, Cin), patch (H*W, 9*Cin), pady (H+2, W+2, Cout)
    """
    # ---- halo padding done in VMEM (no XLA pad, no HBM im2col) --------------
    padin_ref[...] = jnp.zeros(padin_ref.shape, padin_ref.dtype)
    padin_ref[1:H + 1, 1:W + 1, :] = x_ref[0]

    # ---- im2col into VMEM scratch: row = (qy, qx), col = (ky, kx, ci) -------
    # Static unroll (H <= 16 at these shapes).
    for qy in range(H):
        r0 = qy * W
        for ky in range(3):
            src = padin_ref[qy + ky]                       # (W+2, Cin)
            for kx in range(3):
                c0 = (ky * 3 + kx) * Cin
                patch_ref[r0:r0 + W, c0:c0 + Cin] = src[kx:kx + W, :]

    # ---- single K = 9*Cin MXU matmul + folded epilogue ----------------------
    y = jnp.dot(patch_ref[...], w_ref[...],
                preferred_element_type=jnp.float32)
    y = jnp.maximum(y + s_ref[...], 0.0)                   # (H*W, Cout)

    # ---- pad conv result for the 4-tap bilinear upsample phases -------------
    pady_ref[...] = jnp.zeros(pady_ref.shape, pady_ref.dtype)
    for qy in range(H):
        pady_ref[1 + qy, 1:W + 1, :] = y[qy * W:(qy + 1) * W, :]

    # 3x3 neighbourhood loads (shared by all phases).
    nb = {}
    for dy in (-1, 0, 1):
        for dx in (-1, 0, 1):
            nb[(dy, dx)] = pady_ref[1 + dy:1 + dy + H, 1 + dx:1 + dx + W, :]

    half = f // 2
    for ry in range(f):
        dy1 = -1 if ry < half else 1
        for rx in range(f):
            dx1 = -1 if rx < half else 1
            b0 = (ry * f + rx) * 4
            out_ref[0, ry, rx] = (
                pw_ref[b0 + 0:b0 + 1, :] * nb[(0, 0)]
                + pw_ref[b0 + 1:b0 + 2, :] * nb[(0, dx1)]
                + pw_ref[b0 + 2:b0 + 3, :] * nb[(dy1, 0)]
                + pw_ref[b0 + 3:b0 + 4, :] * nb[(dy1, dx1)])


def _node_conv_kernel(a_ref, b_ref, w_ref, s_ref, out_ref,
                      pad_ref, patch_ref, *, H, W, Cin):
    """Node DeformConv on (a + b): residual add fused into the padded-scratch
    fill, halo padding + im2col in VMEM, single K=9*Cin matmul, folded
    0.5*mask/eval-BN epilogue, ReLU.

    a, b: (1, H, W, Cin);  w: (9*Cin, Cout);  s: (1, Cout)
    out:  (1, H*W, Cout)
    """
    pad_ref[...] = jnp.zeros(pad_ref.shape, pad_ref.dtype)
    pad_ref[1:H + 1, 1:W + 1, :] = a_ref[0] + b_ref[0]     # fused residual add

    for qy in range(H):
        r0 = qy * W
        for ky in range(3):
            src = pad_ref[qy + ky]                         # (W+2, Cin)
            for kx in range(3):
                c0 = (ky * 3 + kx) * Cin
                patch_ref[r0:r0 + W, c0:c0 + Cin] = src[kx:kx + W, :]

    y = jnp.dot(patch_ref[...], w_ref[...],
                preferred_element_type=jnp.float32)
    out_ref[0] = jnp.maximum(y + s_ref[...], 0.0)


# ============================== op wrappers ==================================

def _fold_dcn_bn(p):
    """Fold DCN mask(0.5), DCN bias and eval-mode BatchNorm into (w, shift)."""
    w = p["w"]                                             # (3, 3, Cin, Cout)
    cin, cout = w.shape[2], w.shape[3]
    scale = p["gamma"] / jnp.sqrt(p["var"] + BN_EPS)
    w_f = (w * (0.5 * scale)).reshape(9 * cin, cout)
    s_f = (p["b"] * scale + p["beta"] - p["mean"] * scale).reshape(1, cout)
    return w_f, s_f


def _phase_up_weights(up_w, f):
    """Per-output-phase 4-tap weights for ConvTranspose2d(C, C, 2f, stride=f,
    padding=f//2, groups=C, bias=False).  up_w: (C, 2f, 2f) -> (f*f*4, C)."""
    h = f // 2
    rows = []
    for ry in range(f):
        dy1 = -1 if ry < h else 1
        ty0, ty1 = ry + h, ry + h - dy1 * f
        for rx in range(f):
            dx1 = -1 if rx < h else 1
            tx0, tx1 = rx + h, rx + h - dx1 * f
            rows += [up_w[:, ty0, tx0], up_w[:, ty0, tx1],
                     up_w[:, ty1, tx0], up_w[:, ty1, tx1]]
    return jnp.stack(rows, axis=0)                         # (f*f*4, C)


def proj_upsample(x, conv_p, up_w, f):
    """DeformConv(proj) + depthwise bilinear transposed-conv upsample, fused.

    x: (N, H, W, Cin) NHWC  ->  (N, H*f, W*f, Cout)
    """
    assert f >= 2 and f % 2 == 0, f
    n, h, w_, cin = x.shape
    cout = conv_p["w"].shape[-1]
    w_f, s_f = _fold_dcn_bn(conv_p)
    pw = _phase_up_weights(up_w, f)

    out6 = pl.pallas_call(
        functools.partial(_proj_up_kernel, H=h, W=w_, Cin=cin, f=f),
        out_shape=jax.ShapeDtypeStruct((n, f, f, h, w_, cout), jnp.float32),
        grid=(n,),
        in_specs=[
            pl.BlockSpec((1, h, w_, cin), lambda i: (i, 0, 0, 0)),
            pl.BlockSpec((9 * cin, cout), lambda i: (0, 0)),
            pl.BlockSpec((1, cout), lambda i: (0, 0)),
            pl.BlockSpec((f * f * 4, cout), lambda i: (0, 0)),
        ],
        out_specs=pl.BlockSpec((1, f, f, h, w_, cout),
                               lambda i: (i, 0, 0, 0, 0, 0)),
        scratch_shapes=[
            pltpu.VMEM((h + 2, w_ + 2, cin), jnp.float32),
            pltpu.VMEM((h * w_, 9 * cin), jnp.float32),
            pltpu.VMEM((h + 2, w_ + 2, cout), jnp.float32),
        ],
        compiler_params=pltpu.CompilerParams(
            dimension_semantics=("parallel",),
            vmem_limit_bytes=_VMEM_LIMIT),
    )(x, w_f, s_f, pw)

    # phase-major (N, f, f, H, W, C) -> interleaved (N, H*f, W*f, C)
    out = jnp.transpose(out6, (0, 3, 1, 4, 2, 5)).reshape(
        n, h * f, w_ * f, cout)
    return out


def node_conv(a, b, conv_p):
    """DeformConv(node) applied to (a + b); the residual add is fused.

    a, b: (N, H, W, Cin) NHWC  ->  (N, H, W, Cout)
    """
    assert a.shape == b.shape, (a.shape, b.shape)
    n, h, w_, cin = a.shape
    cout = conv_p["w"].shape[-1]
    w_f, s_f = _fold_dcn_bn(conv_p)

    out = pl.pallas_call(
        functools.partial(_node_conv_kernel, H=h, W=w_, Cin=cin),
        out_shape=jax.ShapeDtypeStruct((n, h * w_, cout), jnp.float32),
        grid=(n,),
        in_specs=[
            pl.BlockSpec((1, h, w_, cin), lambda i: (i, 0, 0, 0)),
            pl.BlockSpec((1, h, w_, cin), lambda i: (i, 0, 0, 0)),
            pl.BlockSpec((9 * cin, cout), lambda i: (0, 0)),
            pl.BlockSpec((1, cout), lambda i: (0, 0)),
        ],
        out_specs=pl.BlockSpec((1, h * w_, cout), lambda i: (i, 0, 0)),
        scratch_shapes=[
            pltpu.VMEM((h + 2, w_ + 2, cin), jnp.float32),
            pltpu.VMEM((h * w_, 9 * cin), jnp.float32),
        ],
        compiler_params=pltpu.CompilerParams(
            dimension_semantics=("parallel",),
            vmem_limit_bytes=_VMEM_LIMIT),
    )(a, b, w_f, s_f)
    return out.reshape(n, h, w_, cout)


# ========================= parameter construction ============================

def _bilinear_up_weight(c, f):
    """fill_up_weights() for ConvTranspose2d(c, c, 2f, groups=c)."""
    k = 2 * f
    fc = math.ceil(k / 2)
    ctr = (2 * fc - 1 - fc % 2) / (2.0 * fc)
    w = np.zeros((k, k), np.float32)
    for i in range(k):
        for j in range(k):
            w[i, j] = (1 - abs(i / fc - ctr)) * (1 - abs(j / fc - ctr))
    return jnp.asarray(np.broadcast_to(w[None], (c, k, k)).copy())


def _make_deform_conv_params(key, chi, cho):
    k1, k2, k3, k4 = jax.random.split(key, 4)
    stdv = 1.0 / math.sqrt(9 * chi)
    return dict(
        w=jax.random.uniform(k1, (3, 3, chi, cho), jnp.float32, -stdv, stdv),
        b=0.01 * jax.random.normal(k2, (cho,), jnp.float32),
        gamma=1.0 + 0.1 * jax.random.normal(k3, (cho,), jnp.float32),
        beta=0.1 * jax.random.normal(k4, (cho,), jnp.float32),
        mean=jnp.zeros((cho,), jnp.float32),
        var=jnp.ones((cho,), jnp.float32),
    )


def _make_ida_up_params(key, o, channels, up_f):
    params = {}
    keys = jax.random.split(key, len(channels) - 1)
    for i in range(1, len(channels)):
        kp, kn = jax.random.split(keys[i - 1])
        f = int(up_f[i])
        params[i] = dict(
            proj=_make_deform_conv_params(kp, channels[i], o),
            node=_make_deform_conv_params(kn, o, o),
            up_w=_bilinear_up_weight(o, f),
            up_f=f,
        )
    return params


def _make_dla_up_params(key, startp, channels, scales):
    in_channels = list(channels)
    channels = list(channels)
    scales = np.array(scales, dtype=int)
    params = {}
    keys = jax.random.split(key, len(channels) - 1)
    for i in range(len(channels) - 1):
        j = -i - 2
        params[i] = _make_ida_up_params(
            keys[i], channels[j], in_channels[j:],
            list(scales[j:] // scales[j]))
        scales[j + 1:] = scales[j]
        in_channels[j + 1:] = [channels[j] for _ in channels[j + 1:]]
    return params


def make_dla_seg_up_params(key):
    channels = CHANNELS
    scales = [2 ** i for i in range(len(channels[FIRST_LEVEL:]))]
    k1, k2 = jax.random.split(key)
    dla_up = _make_dla_up_params(k1, FIRST_LEVEL, channels[FIRST_LEVEL:],
                                 scales)
    oc = OUT_CHANNEL if OUT_CHANNEL != 0 else channels[FIRST_LEVEL]
    ida_up = _make_ida_up_params(
        k2, oc, channels[FIRST_LEVEL:LAST_LEVEL],
        [2 ** i for i in range(LAST_LEVEL - FIRST_LEVEL)])
    return dict(dla_up=dla_up, ida_up=ida_up)


# ================================ forward ====================================

def ida_up_forward(params, layers, startp, endp):
    layers = list(layers)
    for i in range(startp + 1, endp):
        p = params[i - startp]
        t = proj_upsample(layers[i], p["proj"], p["up_w"], p["up_f"])
        layers[i] = node_conv(t, layers[i - 1], p["node"])   # residual fused
    return layers


def dla_up_forward(params, layers, startp):
    layers = list(layers)
    out = [layers[-1]]
    for i in range(len(layers) - startp - 1):
        layers = ida_up_forward(params[i], layers,
                                len(layers) - i - 2, len(layers))
        out.insert(0, layers[-1])
    return out


def dla_seg_up_forward(params, x_nchw):
    """x_nchw: list of NCHW DLA feature maps, x_nchw[i]: (N, CHANNELS[i], H/2^i, W/2^i)."""
    x = [jnp.transpose(t, (0, 2, 3, 1)) for t in x_nchw]        # NCHW -> NHWC
    x = dla_up_forward(params["dla_up"], x, FIRST_LEVEL)
    y = [x[i] for i in range(LAST_LEVEL - FIRST_LEVEL)]
    y = ida_up_forward(params["ida_up"], y, 0, len(y))
    return jnp.transpose(y[-1], (0, 3, 1, 2))                    # NHWC -> NCHW


# ================================== main =====================================

if __name__ == "__main__":
    key = jax.random.PRNGKey(0)
    kp, kx = jax.random.split(key)
    params = make_dla_seg_up_params(kp)

    batch, base = 2, 64
    xkeys = jax.random.split(kx, len(CHANNELS))
    x = [jax.random.normal(xkeys[i], (batch, c, base >> i, base >> i),
                           jnp.float32)
         for i, c in enumerate(CHANNELS)]

    out = dla_seg_up_forward(params, x)
    out = jax.block_until_ready(out)

    expect = (batch, CHANNELS[FIRST_LEVEL],
              base // DOWN_RATIO, base // DOWN_RATIO)
    assert out.shape == expect, (out.shape, expect)
    assert out.dtype == jnp.float32
    print("KERNEL_OK")
</pallas_src>

<mosaic_0001>
module attributes {stable_mosaic.version = 11 : i64} {
  func.func @_proj_up_kernel(%arg0: i32, %arg1: memref<1x2x2x128xf32, #tpu.memory_space<vmem>>, %arg2: memref<1152x64xf32, #tpu.memory_space<vmem>>, %arg3: memref<1x64xf32, #tpu.memory_space<vmem>>, %arg4: memref<16x64xf32, #tpu.memory_space<vmem>>, %arg5: memref<1x2x2x2x2x64xf32, #tpu.memory_space<vmem>>, %arg6: memref<4x4x128xf32, #tpu.memory_space<vmem>>, %arg7: memref<4x1152xf32, #tpu.memory_space<vmem>>, %arg8: memref<4x4x64xf32, #tpu.memory_space<vmem>>) attributes {dimension_semantics = [#tpu.dimension_semantics<parallel>], iteration_bounds = array<i64: 2>, scalar_prefetch = 0 : i64, scratch_operands = 3 : i64, tpu.core_type = #tpu.core_type<tc>, window_params = [{transform_indices = @transform_0, window_bounds = array<i64: 1, 2, 2, 128>}, {pipeline_mode = #tpu.pipeline_mode<synchronous>, transform_indices = @transform_1, window_bounds = array<i64: 1152, 64>}, {pipeline_mode = #tpu.pipeline_mode<synchronous>, transform_indices = @transform_2, window_bounds = array<i64: 1, 64>}, {pipeline_mode = #tpu.pipeline_mode<synchronous>, transform_indices = @transform_3, window_bounds = array<i64: 16, 64>}, {transform_indices = @transform_4, window_bounds = array<i64: 1, 2, 2, 2, 2, 64>}]} {
    %cst = arith.constant 0.000000e+00 : f32
    %0 = vector.broadcast %cst : f32 to vector<4x4x128xf32>
    %c0 = arith.constant 0 : index
    %c0_0 = arith.constant 0 : index
    %c0_1 = arith.constant 0 : index
    %1 = vector.load %arg6[%c0, %c0_0, %c0_1] : memref<4x4x128xf32, #tpu.memory_space<vmem>>, vector<4x4x128xf32>
    tpu.vector_store %arg6[%c0, %c0_0, %c0_1], %0 {strides = array<i32>} : memref<4x4x128xf32, #tpu.memory_space<vmem>>, vector<4x4x128xf32>,
    %c0_2 = arith.constant 0 : index
    %c0_3 = arith.constant 0 : index
    %c0_4 = arith.constant 0 : index
    %c0_5 = arith.constant 0 : index
    %2 = vector.load %arg1[%c0_2, %c0_3, %c0_4, %c0_5] : memref<1x2x2x128xf32, #tpu.memory_space<vmem>>, vector<1x2x2x128xf32>
    %3 = vector.shape_cast %2 : vector<1x2x2x128xf32> to vector<2x2x128xf32>
    %c1 = arith.constant 1 : index
    %c1_6 = arith.constant 1 : index
    %c0_7 = arith.constant 0 : index
    %4 = vector.load %arg6[%c1, %c1_6, %c0_7] : memref<4x4x128xf32, #tpu.memory_space<vmem>>, vector<2x2x128xf32>
    tpu.vector_store %arg6[%c1, %c1_6, %c0_7], %3 {strides = array<i32>} : memref<4x4x128xf32, #tpu.memory_space<vmem>>, vector<2x2x128xf32>,
    %c0_8 = arith.constant 0 : index
    %c0_9 = arith.constant 0 : index
    %c0_10 = arith.constant 0 : index
    %5 = vector.load %arg6[%c0_8, %c0_9, %c0_10] : memref<4x4x128xf32, #tpu.memory_space<vmem>>, vector<1x4x128xf32>
    %6 = vector.shape_cast %5 : vector<1x4x128xf32> to vector<4x128xf32>
    %7 = vector.extract_strided_slice %6 {offsets = [0, 0], sizes = [2, 128], strides = [1, 1]} : vector<4x128xf32> to vector<2x128xf32>
    %c0_11 = arith.constant 0 : index
    %c0_12 = arith.constant 0 : index
    %8 = vector.load %arg7[%c0_11, %c0_12] : memref<4x1152xf32, #tpu.memory_space<vmem>>, vector<2x128xf32>
    tpu.vector_store %arg7[%c0_11, %c0_12], %7 {strides = array<i32>} : memref<4x1152xf32, #tpu.memory_space<vmem>>, vector<2x128xf32>,
    %9 = vector.extract_strided_slice %6 {offsets = [1, 0], sizes = [2, 128], strides = [1, 1]} : vector<4x128xf32> to vector<2x128xf32>
    %c0_13 = arith.constant 0 : index
    %c128 = arith.constant 128 : index
    %10 = vector.load %arg7[%c0_13, %c128] : memref<4x1152xf32, #tpu.memory_space<vmem>>, vector<2x128xf32>
    tpu.vector_store %arg7[%c0_13, %c128], %9 {strides = array<i32>} : memref<4x1152xf32, #tpu.memory_space<vmem>>, vector<2x128xf32>,
    %11 = vector.extract_strided_slice %6 {offsets = [2, 0], sizes = [2, 128], strides = [1, 1]} : vector<4x128xf32> to vector<2x128xf32>
    %c0_14 = arith.constant 0 : index
    %c256 = arith.constant 256 : index
    %12 = vector.load %arg7[%c0_14, %c256] : memref<4x1152xf32, #tpu.memory_space<vmem>>, vector<2x128xf32>
    tpu.vector_store %arg7[%c0_14, %c256], %11 {strides = array<i32>} : memref<4x1152xf32, #tpu.memory_space<vmem>>, vector<2x128xf32>,
    %c1_15 = arith.constant 1 : index
    %c0_16 = arith.constant 0 : index
    %c0_17 = arith.constant 0 : index
    %13 = vector.load %arg6[%c1_15, %c0_16, %c0_17] : memref<4x4x128xf32, #tpu.memory_space<vmem>>, vector<1x4x128xf32>
    %14 = vector.shape_cast %13 : vector<1x4x128xf32> to vector<4x128xf32>
    %15 = vector.extract_strided_slice %14 {offsets = [0, 0], sizes = [2, 128], strides = [1, 1]} : vector<4x128xf32> to vector<2x128xf32>
    %c0_18 = arith.constant 0 : index
    %c384 = arith.constant 384 : index
    %16 = vector.load %arg7[%c0_18, %c384] : memref<4x1152xf32, #tpu.memory_space<vmem>>, vector<2x128xf32>
    tpu.vector_store %arg7[%c0_18, %c384], %15 {strides = array<i32>} : memref<4x1152xf32, #tpu.memory_space<vmem>>, vector<2x128xf32>,
    %17 = vector.extract_strided_slice %14 {offsets = [1, 0], sizes = [2, 128], strides = [1, 1]} : vector<4x128xf32> to vector<2x128xf32>
    %c0_19 = arith.constant 0 : index
    %c512 = arith.constant 512 : index
    %18 = vector.load %arg7[%c0_19, %c512] : memref<4x1152xf32, #tpu.memory_space<vmem>>, vector<2x128xf32>
    tpu.vector_store %arg7[%c0_19, %c512], %17 {strides = array<i32>} : memref<4x1152xf32, #tpu.memory_space<vmem>>, vector<2x128xf32>,
    %19 = vector.extract_strided_slice %14 {offsets = [2, 0], sizes = [2, 128], strides = [1, 1]} : vector<4x128xf32> to vector<2x128xf32>
    %c0_20 = arith.constant 0 : index
    %c640 = arith.constant 640 : index
    %20 = vector.load %arg7[%c0_20, %c640] : memref<4x1152xf32, #tpu.memory_space<vmem>>, vector<2x128xf32>
    tpu.vector_store %arg7[%c0_20, %c640], %19 {strides = array<i32>} : memref<4x1152xf32, #tpu.memory_space<vmem>>, vector<2x128xf32>,
    %c2 = arith.constant 2 : index
    %c0_21 = arith.constant 0 : index
    %c0_22 = arith.constant 0 : index
    %21 = vector.load %arg6[%c2, %c0_21, %c0_22] : memref<4x4x128xf32, #tpu.memory_space<vmem>>, vector<1x4x128xf32>
    %22 = vector.shape_cast %21 : vector<1x4x128xf32> to vector<4x128xf32>
    %23 = vector.extract_strided_slice %22 {offsets = [0, 0], sizes = [2, 128], strides = [1, 1]} : vector<4x128xf32> to vector<2x128xf32>
    %c0_23 = arith.constant 0 : index
    %c768 = arith.constant 768 : index
    %24 = vector.load %arg7[%c0_23, %c768] : memref<4x1152xf32, #tpu.memory_space<vmem>>, vector<2x128xf32>
    tpu.vector_store %arg7[%c0_23, %c768], %23 {strides = array<i32>} : memref<4x1152xf32, #tpu.memory_space<vmem>>, vector<2x128xf32>,
    %25 = vector.extract_strided_slice %22 {offsets = [1, 0], sizes = [2, 128], strides = [1, 1]} : vector<4x128xf32> to vector<2x128xf32>
    %c0_24 = arith.constant 0 : index
    %c896 = arith.constant 896 : index
    %26 = vector.load %arg7[%c0_24, %c896] : memref<4x1152xf32, #tpu.memory_space<vmem>>, vector<2x128xf32>
    tpu.vector_store %arg7[%c0_24, %c896], %25 {strides = array<i32>} : memref<4x1152xf32, #tpu.memory_space<vmem>>, vector<2x128xf32>,
    %27 = vector.extract_strided_slice %22 {offsets = [2, 0], sizes = [2, 128], strides = [1, 1]} : vector<4x128xf32> to vector<2x128xf32>
    %c0_25 = arith.constant 0 : index
    %c1024 = arith.constant 1024 : index
    %28 = vector.load %arg7[%c0_25, %c1024] : memref<4x1152xf32, #tpu.memory_space<vmem>>, vector<2x128xf32>
    tpu.vector_store %arg7[%c0_25, %c1024], %27 {strides = array<i32>} : memref<4x1152xf32, #tpu.memory_space<vmem>>, vector<2x128xf32>,
    %c1_26 = arith.constant 1 : index
    %c0_27 = arith.constant 0 : index
    %c0_28 = arith.constant 0 : index
    %29 = vector.load %arg6[%c1_26, %c0_27, %c0_28] : memref<4x4x128xf32, #tpu.memory_space<vmem>>, vector<1x4x128xf32>
    %30 = vector.shape_cast %29 : vector<1x4x128xf32> to vector<4x128xf32>
    %31 = vector.extract_strided_slice %30 {offsets = [0, 0], sizes = [2, 128], strides = [1, 1]} : vector<4x128xf32> to vector<2x128xf32>
    %c2_29 = arith.constant 2 : index
    %c0_30 = arith.constant 0 : index
    %32 = vector.load %arg7[%c2_29, %c0_30] : memref<4x1152xf32, #tpu.memory_space<vmem>>, vector<2x128xf32>
    tpu.vector_store %arg7[%c2_29, %c0_30], %31 {strides = array<i32>} : memref<4x1152xf32, #tpu.memory_space<vmem>>, vector<2x128xf32>,
    %33 = vector.extract_strided_slice %30 {offsets = [1, 0], sizes = [2, 128], strides = [1, 1]} : vector<4x128xf32> to vector<2x128xf32>
    %c2_31 = arith.constant 2 : index
    %c128_32 = arith.constant 128 : index
    %34 = vector.load %arg7[%c2_31, %c128_32] : memref<4x1152xf32, #tpu.memory_space<vmem>>, vector<2x128xf32>
    tpu.vector_store %arg7[%c2_31, %c128_32], %33 {strides = array<i32>} : memref<4x1152xf32, #tpu.memory_space<vmem>>, vector<2x128xf32>,
    %35 = vector.extract_strided_slice %30 {offsets = [2, 0], sizes = [2, 128], strides = [1, 1]} : vector<4x128xf32> to vector<2x128xf32>
    %c2_33 = arith.constant 2 : index
    %c256_34 = arith.constant 256 : index
    %36 = vector.load %arg7[%c2_33, %c256_34] : memref<4x1152xf32, #tpu.memory_space<vmem>>, vector<2x128xf32>
    tpu.vector_store %arg7[%c2_33, %c256_34], %35 {strides = array<i32>} : memref<4x1152xf32, #tpu.memory_space<vmem>>, vector<2x128xf32>,
    %c2_35 = arith.constant 2 : index
    %c0_36 = arith.constant 0 : index
    %c0_37 = arith.constant 0 : index
    %37 = vector.load %arg6[%c2_35, %c0_36, %c0_37] : memref<4x4x128xf32, #tpu.memory_space<vmem>>, vector<1x4x128xf32>
    %38 = vector.shape_cast %37 : vector<1x4x128xf32> to vector<4x128xf32>
    %39 = vector.extract_strided_slice %38 {offsets = [0, 0], sizes = [2, 128], strides = [1, 1]} : vector<4x128xf32> to vector<2x128xf32>
    %c2_38 = arith.constant 2 : index
    %c384_39 = arith.constant 384 : index
    %40 = vector.load %arg7[%c2_38, %c384_39] : memref<4x1152xf32, #tpu.memory_space<vmem>>, vector<2x128xf32>
    tpu.vector_store %arg7[%c2_38, %c384_39], %39 {strides = array<i32>} : memref<4x1152xf32, #tpu.memory_space<vmem>>, vector<2x128xf32>,
    %41 = vector.extract_strided_slice %38 {offsets = [1, 0], sizes = [2, 128], strides = [1, 1]} : vector<4x128xf32> to vector<2x128xf32>
    %c2_40 = arith.constant 2 : index
    %c512_41 = arith.constant 512 : index
    %42 = vector.load %arg7[%c2_40, %c512_41] : memref<4x1152xf32, #tpu.memory_space<vmem>>, vector<2x128xf32>
    tpu.vector_store %arg7[%c2_40, %c512_41], %41 {strides = array<i32>} : memref<4x1152xf32, #tpu.memory_space<vmem>>, vector<2x128xf32>,
    %43 = vector.extract_strided_slice %38 {offsets = [2, 0], sizes = [2, 128], strides = [1, 1]} : vector<4x128xf32> to vector<2x128xf32>
    %c2_42 = arith.constant 2 : index
    %c640_43 = arith.constant 640 : index
    %44 = vector.load %arg7[%c2_42, %c640_43] : memref<4x1152xf32, #tpu.memory_space<vmem>>, vector<2x128xf32>
    tpu.vector_store %arg7[%c2_42, %c640_43], %43 {strides = array<i32>} : memref<4x1152xf32, #tpu.memory_space<vmem>>, vector<2x128xf32>,
    %c3 = arith.constant 3 : index
    %c0_44 = arith.constant 0 : index
    %c0_45 = arith.constant 0 : index
    %45 = vector.load %arg6[%c3, %c0_44, %c0_45] : memref<4x4x128xf32, #tpu.memory_space<vmem>>, vector<1x4x128xf32>
    %46 = vector.shape_cast %45 : vector<1x4x128xf32> to vector<4x128xf32>
    %47 = vector.extract_strided_slice %46 {offsets = [0, 0], sizes = [2, 128], strides = [1, 1]} : vector<4x128xf32> to vector<2x128xf32>
    %c2_46 = arith.constant 2 : index
    %c768_47 = arith.constant 768 : index
    %48 = vector.load %arg7[%c2_46, %c768_47] : memref<4x1152xf32, #tpu.memory_space<vmem>>, vector<2x128xf32>
    tpu.vector_store %arg7[%c2_46, %c768_47], %47 {strides = array<i32>} : memref<4x1152xf32, #tpu.memory_space<vmem>>, vector<2x128xf32>,
    %49 = vector.extract_strided_slice %46 {offsets = [1, 0], sizes = [2, 128], strides = [1, 1]} : vector<4x128xf32> to vector<2x128xf32>
    %c2_48 = arith.constant 2 : index
    %c896_49 = arith.constant 896 : index
    %50 = vector.load %arg7[%c2_48, %c896_49] : memref<4x1152xf32, #tpu.memory_space<vmem>>, vector<2x128xf32>
    tpu.vector_store %arg7[%c2_48, %c896_49], %49 {strides = array<i32>} : memref<4x1152xf32, #tpu.memory_space<vmem>>, vector<2x128xf32>,
    %51 = vector.extract_strided_slice %46 {offsets = [2, 0], sizes = [2, 128], strides = [1, 1]} : vector<4x128xf32> to vector<2x128xf32>
    %c2_50 = arith.constant 2 : index
    %c1024_51 = arith.constant 1024 : index
    %52 = vector.load %arg7[%c2_50, %c1024_51] : memref<4x1152xf32, #tpu.memory_space<vmem>>, vector<2x128xf32>
    tpu.vector_store %arg7[%c2_50, %c1024_51], %51 {strides = array<i32>} : memref<4x1152xf32, #tpu.memory_space<vmem>>, vector<2x128xf32>,
    %c0_52 = arith.constant 0 : index
    %c0_53 = arith.constant 0 : index
    %53 = vector.load %arg7[%c0_52, %c0_53] : memref<4x1152xf32, #tpu.memory_space<vmem>>, vector<4x1152xf32>
    %c0_54 = arith.constant 0 : index
    %c0_55 = arith.constant 0 : index
    %54 = vector.load %arg2[%c0_54, %c0_55] : memref<1152x64xf32, #tpu.memory_space<vmem>>, vector<1152x64xf32>
    %cst_56 = arith.constant dense<0.000000e+00> : vector<4x64xf32>
    %55 = tpu.matmul %53, %54, %cst_56 {dimension_numbers = #tpu.dot_dimension_numbers<[1], [0], [0], [1], [0, 0, 1, 1], [], []>} : vector<4x1152xf32>, vector<1152x64xf32>, vector<4x64xf32> -> vector<4x64xf32>
    %c0_57 = arith.constant 0 : index
    %c0_58 = arith.constant 0 : index
    %56 = vector.load %arg3[%c0_57, %c0_58] : memref<1x64xf32, #tpu.memory_space<vmem>>, vector<1x64xf32>
    %57 = vector.broadcast %56 : vector<1x64xf32> to vector<4x64xf32>
    %58 = arith.addf %55, %57 : vector<4x64xf32>
    %cst_59 = arith.constant 0.000000e+00 : f32
    %59 = vector.broadcast %cst_59 : f32 to vector<4x64xf32>
    %60 = arith.maximumf %58, %59 : vector<4x64xf32>
    %cst_60 = arith.constant 0.000000e+00 : f32
    %61 = vector.broadcast %cst_60 : f32 to vector<4x4x64xf32>
    %c0_61 = arith.constant 0 : index
    %c0_62 = arith.constant 0 : index
    %c0_63 = arith.constant 0 : index
    %62 = vector.load %arg8[%c0_61, %c0_62, %c0_63] : memref<4x4x64xf32, #tpu.memory_space<vmem>>, vector<4x4x64xf32>
    tpu.vector_store %arg8[%c0_61, %c0_62, %c0_63], %61 {strides = array<i32>} : memref<4x4x64xf32, #tpu.memory_space<vmem>>, vector<4x4x64xf32>,
    %63 = vector.extract_strided_slice %60 {offsets = [0, 0], sizes = [2, 64], strides = [1, 1]} : vector<4x64xf32> to vector<2x64xf32>
    %c1_64 = arith.constant 1 : index
    %c1_65 = arith.constant 1 : index
    %c0_66 = arith.constant 0 : index
    %64 = vector.load %arg8[%c1_64, %c1_65, %c0_66] : memref<4x4x64xf32, #tpu.memory_space<vmem>>, vector<1x2x64xf32>
    %65 = vector.shape_cast %64 : vector<1x2x64xf32> to vector<2x64xf32>
    %66 = vector.shape_cast %63 : vector<2x64xf32> to vector<1x2x64xf32>
    tpu.vector_store %arg8[%c1_64, %c1_65, %c0_66], %66 {strides = array<i32>} : memref<4x4x64xf32, #tpu.memory_space<vmem>>, vector<1x2x64xf32>,
    %67 = vector.extract_strided_slice %60 {offsets = [2, 0], sizes = [2, 64], strides = [1, 1]} : vector<4x64xf32> to vector<2x64xf32>
    %c2_67 = arith.constant 2 : index
    %c1_68 = arith.constant 1 : index
    %c0_69 = arith.constant 0 : index
    %68 = vector.load %arg8[%c2_67, %c1_68, %c0_69] : memref<4x4x64xf32, #tpu.memory_space<vmem>>, vector<1x2x64xf32>
    %69 = vector.shape_cast %68 : vector<1x2x64xf32> to vector<2x64xf32>
    %70 = vector.shape_cast %67 : vector<2x64xf32> to vector<1x2x64xf32>
    tpu.vector_store %arg8[%c2_67, %c1_68, %c0_69], %70 {strides = array<i32>} : memref<4x4x64xf32, #tpu.memory_space<vmem>>, vector<1x2x64xf32>,
    %c0_70 = arith.constant 0 : index
    %c0_71 = arith.constant 0 : index
    %c0_72 = arith.constant 0 : index
    %71 = vector.load %arg8[%c0_70, %c0_71, %c0_72] : memref<4x4x64xf32, #tpu.memory_space<vmem>>, vector<2x2x64xf32>
    %c0_73 = arith.constant 0 : index
    %c1_74 = arith.constant 1 : index
    %c0_75 = arith.constant 0 : index
    %72 = vector.load %arg8[%c0_73, %c1_74, %c0_75] : memref<4x4x64xf32, #tpu.memory_space<vmem>>, vector<2x2x64xf32>
    %c0_76 = arith.constant 0 : index
    %c2_77 = arith.constant 2 : index
    %c0_78 = arith.constant 0 : index
    %73 = vector.load %arg8[%c0_76, %c2_77, %c0_78] : memref<4x4x64xf32, #tpu.memory_space<vmem>>, vector<2x2x64xf32>
    %c1_79 = arith.constant 1 : index
    %c0_80 = arith.constant 0 : index
    %c0_81 = arith.constant 0 : index
    %74 = vector.load %arg8[%c1_79, %c0_80, %c0_81] : memref<4x4x64xf32, #tpu.memory_space<vmem>>, vector<2x2x64xf32>
    %c1_82 = arith.constant 1 : index
    %c1_83 = arith.constant 1 : index
    %c0_84 = arith.constant 0 : index
    %75 = vector.load %arg8[%c1_82, %c1_83, %c0_84] : memref<4x4x64xf32, #tpu.memory_space<vmem>>, vector<2x2x64xf32>
    %c1_85 = arith.constant 1 : index
    %c2_86 = arith.constant 2 : index
    %c0_87 = arith.constant 0 : index
    %76 = vector.load %arg8[%c1_85, %c2_86, %c0_87] : memref<4x4x64xf32, #tpu.memory_space<vmem>>, vector<2x2x64xf32>
    %c2_88 = arith.constant 2 : index
    %c0_89 = arith.constant 0 : index
    %c0_90 = arith.constant 0 : index
    %77 = vector.load %arg8[%c2_88, %c0_89, %c0_90] : memref<4x4x64xf32, #tpu.memory_space<vmem>>, vector<2x2x64xf32>
    %c2_91 = arith.constant 2 : index
    %c1_92 = arith.constant 1 : index
    %c0_93 = arith.constant 0 : index
    %78 = vector.load %arg8[%c2_91, %c1_92, %c0_93] : memref<4x4x64xf32, #tpu.memory_space<vmem>>, vector<2x2x64xf32>
    %c2_94 = arith.constant 2 : index
    %c2_95 = arith.constant 2 : index
    %c0_96 = arith.constant 0 : index
    %79 = vector.load %arg8[%c2_94, %c2_95, %c0_96] : memref<4x4x64xf32, #tpu.memory_space<vmem>>, vector<2x2x64xf32>
    %c0_97 = arith.constant 0 : index
    %c0_98 = arith.constant 0 : index
    %80 = vector.load %arg4[%c0_97, %c0_98] : memref<16x64xf32, #tpu.memory_space<vmem>>, vector<1x64xf32>
    %81 = vector.shape_cast %80 : vector<1x64xf32> to vector<1x1x64xf32>
    %82 = vector.broadcast %81 : vector<1x1x64xf32> to vector<2x2x64xf32>
    %83 = arith.mulf %82, %75 : vector<2x2x64xf32>
    %c1_99 = arith.constant 1 : index
    %c0_100 = arith.constant 0 : index
    %84 = vector.load %arg4[%c1_99, %c0_100] : memref<16x64xf32, #tpu.memory_space<vmem>>, vector<1x64xf32>
    %85 = vector.shape_cast %84 : vector<1x64xf32> to vector<1x1x64xf32>
    %86 = vector.broadcast %85 : vector<1x1x64xf32> to vector<2x2x64xf32>
    %87 = arith.mulf %86, %74 : vector<2x2x64xf32>
    %88 = arith.addf %83, %87 : vector<2x2x64xf32>
    %c2_101 = arith.constant 2 : index
    %c0_102 = arith.constant 0 : index
    %89 = vector.load %arg4[%c2_101, %c0_102] : memref<16x64xf32, #tpu.memory_space<vmem>>, vector<1x64xf32>
    %90 = vector.shape_cast %89 : vector<1x64xf32> to vector<1x1x64xf32>
    %91 = vector.broadcast %90 : vector<1x1x64xf32> to vector<2x2x64xf32>
    %92 = arith.mulf %91, %72 : vector<2x2x64xf32>
    %93 = arith.addf %88, %92 : vector<2x2x64xf32>
    %c3_103 = arith.constant 3 : index
    %c0_104 = arith.constant 0 : index
    %94 = vector.load %arg4[%c3_103, %c0_104] : memref<16x64xf32, #tpu.memory_space<vmem>>, vector<1x64xf32>
    %95 = vector.shape_cast %94 : vector<1x64xf32> to vector<1x1x64xf32>
    %96 = vector.broadcast %95 : vector<1x1x64xf32> to vector<2x2x64xf32>
    %97 = arith.mulf %96, %71 : vector<2x2x64xf32>
    %98 = arith.addf %93, %97 : vector<2x2x64xf32>
    %c0_105 = arith.constant 0 : index
    %c0_106 = arith.constant 0 : index
    %c0_107 = arith.constant 0 : index
    %c0_108 = arith.constant 0 : index
    %c0_109 = arith.constant 0 : index
    %c0_110 = arith.constant 0 : index
    %99 = vector.load %arg5[%c0_105, %c0_106, %c0_107, %c0_108, %c0_109, %c0_110] : memref<1x2x2x2x2x64xf32, #tpu.memory_space<vmem>>, vector<1x1x1x2x2x64xf32>
    %100 = vector.shape_cast %99 : vector<1x1x1x2x2x64xf32> to vector<2x2x64xf32>
    %101 = vector.shape_cast %98 : vector<2x2x64xf32> to vector<1x1x1x2x2x64xf32>
    tpu.vector_store %arg5[%c0_105, %c0_106, %c0_107, %c0_108, %c0_109, %c0_110], %101 {strides = array<i32>} : memref<1x2x2x2x2x64xf32, #tpu.memory_space<vmem>>, vector<1x1x1x2x2x64xf32>,
    %c4 = arith.constant 4 : index
    %c0_111 = arith.constant 0 : index
    %102 = vector.load %arg4[%c4, %c0_111] : memref<16x64xf32, #tpu.memory_space<vmem>>, vector<1x64xf32>
    %103 = vector.shape_cast %102 : vector<1x64xf32> to vector<1x1x64xf32>
    %104 = vector.broadcast %103 : vector<1x1x64xf32> to vector<2x2x64xf32>
    %105 = arith.mulf %104, %75 : vector<2x2x64xf32>
    %c5 = arith.constant 5 : index
    %c0_112 = arith.constant 0 : index
    %106 = vector.load %arg4[%c5, %c0_112] : memref<16x64xf32, #tpu.memory_space<vmem>>, vector<1x64xf32>
    %107 = vector.shape_cast %106 : vector<1x64xf32> to vector<1x1x64xf32>
    %108 = vector.broadcast %107 : vector<1x1x64xf32> to vector<2x2x64xf32>
    %109 = arith.mulf %108, %76 : vector<2x2x64xf32>
    %110 = arith.addf %105, %109 : vector<2x2x64xf32>
    %c6 = arith.constant 6 : index
    %c0_113 = arith.constant 0 : index
    %111 = vector.load %arg4[%c6, %c0_113] : memref<16x64xf32, #tpu.memory_space<vmem>>, vector<1x64xf32>
    %112 = vector.shape_cast %111 : vector<1x64xf32> to vector<1x1x64xf32>
    %113 = vector.broadcast %112 : vector<1x1x64xf32> to vector<2x2x64xf32>
    %114 = arith.mulf %113, %72 : vector<2x2x64xf32>
    %115 = arith.addf %110, %114 : vector<2x2x64xf32>
    %c7 = arith.constant 7 : index
    %c0_114 = arith.constant 0 : index
    %116 = vector.load %arg4[%c7, %c0_114] : memref<16x64xf32, #tpu.memory_space<vmem>>, vector<1x64xf32>
    %117 = vector.shape_cast %116 : vector<1x64xf32> to vector<1x1x64xf32>
    %118 = vector.broadcast %117 : vector<1x1x64xf32> to vector<2x2x64xf32>
    %119 = arith.mulf %118, %73 : vector<2x2x64xf32>
    %120 = arith.addf %115, %119 : vector<2x2x64xf32>
    %c0_115 = arith.constant 0 : index
    %c0_116 = arith.constant 0 : index
    %c1_117 = arith.constant 1 : index
    %c0_118 = arith.constant 0 : index
    %c0_119 = arith.constant 0 : index
    %c0_120 = arith.constant 0 : index
    %121 = vector.load %arg5[%c0_115, %c0_116, %c1_117, %c0_118, %c0_119, %c0_120] : memref<1x2x2x2x2x64xf32, #tpu.memory_space<vmem>>, vector<1x1x1x2x2x64xf32>
    %122 = vector.shape_cast %121 : vector<1x1x1x2x2x64xf32> to vector<2x2x64xf32>
    %123 = vector.shape_cast %120 : vector<2x2x64xf32> to vector<1x1x1x2x2x64xf32>
    tpu.vector_store %arg5[%c0_115, %c0_116, %c1_117, %c0_118, %c0_119, %c0_120], %123 {strides = array<i32>} : memref<1x2x2x2x2x64xf32, #tpu.memory_space<vmem>>, vector<1x1x1x2x2x64xf32>,
    %c8 = arith.constant 8 : index
    %c0_121 = arith.constant 0 : index
    %124 = vector.load %arg4[%c8, %c0_121] : memref<16x64xf32, #tpu.memory_space<vmem>>, vector<1x64xf32>
    %125 = vector.shape_cast %124 : vector<1x64xf32> to vector<1x1x64xf32>
    %126 = vector.broadcast %125 : vector<1x1x64xf32> to vector<2x2x64xf32>
    %127 = arith.mulf %126, %75 : vector<2x2x64xf32>
    %c9 = arith.constant 9 : index
    %c0_122 = arith.constant 0 : index
    %128 = vector.load %arg4[%c9, %c0_122] : memref<16x64xf32, #tpu.memory_space<vmem>>, vector<1x64xf32>
    %129 = vector.shape_cast %128 : vector<1x64xf32> to vector<1x1x64xf32>
    %130 = vector.broadcast %129 : vector<1x1x64xf32> to vector<2x2x64xf32>
    %131 = arith.mulf %130, %74 : vector<2x2x64xf32>
    %132 = arith.addf %127, %131 : vector<2x2x64xf32>
    %c10 = arith.constant 10 : index
    %c0_123 = arith.constant 0 : index
    %133 = vector.load %arg4[%c10, %c0_123] : memref<16x64xf32, #tpu.memory_space<vmem>>, vector<1x64xf32>
    %134 = vector.shape_cast %133 : vector<1x64xf32> to vector<1x1x64xf32>
    %135 = vector.broadcast %134 : vector<1x1x64xf32> to vector<2x2x64xf32>
    %136 = arith.mulf %135, %78 : vector<2x2x64xf32>
    %137 = arith.addf %132, %136 : vector<2x2x64xf32>
    %c11 = arith.constant 11 : index
    %c0_124 = arith.constant 0 : index
    %138 = vector.load %arg4[%c11, %c0_124] : memref<16x64xf32, #tpu.memory_space<vmem>>, vector<1x64xf32>
    %139 = vector.shape_cast %138 : vector<1x64xf32> to vector<1x1x64xf32>
    %140 = vector.broadcast %139 : vector<1x1x64xf32> to vector<2x2x64xf32>
    %141 = arith.mulf %140, %77 : vector<2x2x64xf32>
    %142 = arith.addf %137, %141 : vector<2x2x64xf32>
    %c0_125 = arith.constant 0 : index
    %c1_126 = arith.constant 1 : index
    %c0_127 = arith.constant 0 : index
    %c0_128 = arith.constant 0 : index
    %c0_129 = arith.constant 0 : index
    %c0_130 = arith.constant 0 : index
    %143 = vector.load %arg5[%c0_125, %c1_126, %c0_127, %c0_128, %c0_129, %c0_130] : memref<1x2x2x2x2x64xf32, #tpu.memory_space<vmem>>, vector<1x1x1x2x2x64xf32>
    %144 = vector.shape_cast %143 : vector<1x1x1x2x2x64xf32> to vector<2x2x64xf32>
    %145 = vector.shape_cast %142 : vector<2x2x64xf32> to vector<1x1x1x2x2x64xf32>
    tpu.vector_store %arg5[%c0_125, %c1_126, %c0_127, %c0_128, %c0_129, %c0_130], %145 {strides = array<i32>} : memref<1x2x2x2x2x64xf32, #tpu.memory_space<vmem>>, vector<1x1x1x2x2x64xf32>,
    %c12 = arith.constant 12 : index
    %c0_131 = arith.constant 0 : index
    %146 = vector.load %arg4[%c12, %c0_131] : memref<16x64xf32, #tpu.memory_space<vmem>>, vector<1x64xf32>
    %147 = vector.shape_cast %146 : vector<1x64xf32> to vector<1x1x64xf32>
    %148 = vector.broadcast %147 : vector<1x1x64xf32> to vector<2x2x64xf32>
    %149 = arith.mulf %148, %75 : vector<2x2x64xf32>
    %c13 = arith.constant 13 : index
    %c0_132 = arith.constant 0 : index
    %150 = vector.load %arg4[%c13, %c0_132] : memref<16x64xf32, #tpu.memory_space<vmem>>, vector<1x64xf32>
    %151 = vector.shape_cast %150 : vector<1x64xf32> to vector<1x1x64xf32>
    %152 = vector.broadcast %151 : vector<1x1x64xf32> to vector<2x2x64xf32>
    %153 = arith.mulf %152, %76 : vector<2x2x64xf32>
    %154 = arith.addf %149, %153 : vector<2x2x64xf32>
    %c14 = arith.constant 14 : index
    %c0_133 = arith.constant 0 : index
    %155 = vector.load %arg4[%c14, %c0_133] : memref<16x64xf32, #tpu.memory_space<vmem>>, vector<1x64xf32>
    %156 = vector.shape_cast %155 : vector<1x64xf32> to vector<1x1x64xf32>
    %157 = vector.broadcast %156 : vector<1x1x64xf32> to vector<2x2x64xf32>
    %158 = arith.mulf %157, %78 : vector<2x2x64xf32>
    %159 = arith.addf %154, %158 : vector<2x2x64xf32>
    %c15 = arith.constant 15 : index
    %c0_134 = arith.constant 0 : index
    %160 = vector.load %arg4[%c15, %c0_134] : memref<16x64xf32, #tpu.memory_space<vmem>>, vector<1x64xf32>
    %161 = vector.shape_cast %160 : vector<1x64xf32> to vector<1x1x64xf32>
    %162 = vector.broadcast %161 : vector<1x1x64xf32> to vector<2x2x64xf32>
    %163 = arith.mulf %162, %79 : vector<2x2x64xf32>
    %164 = arith.addf %159, %163 : vector<2x2x64xf32>
    %c0_135 = arith.constant 0 : index
    %c1_136 = arith.constant 1 : index
    %c1_137 = arith.constant 1 : index
    %c0_138 = arith.constant 0 : index
    %c0_139 = arith.constant 0 : index
    %c0_140 = arith.constant 0 : index
    %165 = vector.load %arg5[%c0_135, %c1_136, %c1_137, %c0_138, %c0_139, %c0_140] : memref<1x2x2x2x2x64xf32, #tpu.memory_space<vmem>>, vector<1x1x1x2x2x64xf32>
    %166 = vector.shape_cast %165 : vector<1x1x1x2x2x64xf32> to vector<2x2x64xf32>
    %167 = vector.shape_cast %164 : vector<2x2x64xf32> to vector<1x1x1x2x2x64xf32>
    tpu.vector_store %arg5[%c0_135, %c1_136, %c1_137, %c0_138, %c0_139, %c0_140], %167 {strides = array<i32>} : memref<1x2x2x2x2x64xf32, #tpu.memory_space<vmem>>, vector<1x1x1x2x2x64xf32>,
    return
  }
  func.func @transform_0(%arg0: i32) -> (i32, i32, i32, i32) {
    %c0_i32 = arith.constant 0 : i32
    %c0_i32_0 = arith.constant 0 : i32
    %c0_i32_1 = arith.constant 0 : i32
    %c0_i32_2 = arith.constant 0 : i32
    return %arg0, %c0_i32, %c0_i32_0, %c0_i32_1 : i32, i32, i32, i32
  }
  func.func @transform_1(%arg0: i32) -> (i32, i32) {
    %c0_i32 = arith.constant 0 : i32
    %c0_i32_0 = arith.constant 0 : i32
    %c0_i32_1 = arith.constant 0 : i32
    return %c0_i32, %c0_i32_0 : i32, i32
  }
  func.func @transform_2(%arg0: i32) -> (i32, i32) {
    %c0_i32 = arith.constant 0 : i32
    %c0_i32_0 = arith.constant 0 : i32
    %c0_i32_1 = arith.constant 0 : i32
    return %c0_i32, %c0_i32_0 : i32, i32
  }
  func.func @transform_3(%arg0: i32) -> (i32, i32) {
    %c0_i32 = arith.constant 0 : i32
    %c0_i32_0 = arith.constant 0 : i32
    %c0_i32_1 = arith.constant 0 : i32
    return %c0_i32, %c0_i32_0 : i32, i32
  }
  func.func @transform_4(%arg0: i32) -> (i32, i32, i32, i32, i32, i32) {
    %c0_i32 = arith.constant 0 : i32
    %c0_i32_0 = arith.constant 0 : i32
    %c0_i32_1 = arith.constant 0 : i32
    %c0_i32_2 = arith.constant 0 : i32
    %c0_i32_3 = arith.constant 0 : i32
    %c0_i32_4 = arith.constant 0 : i32
    return %arg0, %c0_i32, %c0_i32_0, %c0_i32_1, %c0_i32_2, %c0_i32_3 : i32, i32, i32, i32, i32, i32
  }
}

</mosaic_0001>

<llo_original>
// kernel: tpu_custom_call.1
$region0: #{tpu_custom_call.1}
  #allocation0 [shape = 'u32[]', space=smem, size = 0x4, offset = 0x4, fixed_abs, tag = 'smem constant byte address 0x4 - core index']
  #allocation1 [shape = 'u32[144,128]{1,0:T(1,128)}', space=vmem, size = 0x12000, scoped, tag = 'internal scratch']
  #allocation2 [shape = 'f32[4,4,128]{2,1,0:T(4,128)}', space=vmem, size = 0x2000, scoped, tag = 'scratch operand']
  #allocation3 [shape = 'f32[4,1152]{1,0:T(4,128)}', space=vmem, size = 0x4800, scoped, tag = 'scratch operand']
  #allocation4 [shape = 'f32[4,4,64]{2,1,0:T(4,128)}', space=vmem, size = 0x2000, scoped, tag = 'scratch operand']
  %s0 = inlined_call_operand.vmem [shape: f32[2,2,2,128], index: 0, kind: input, shape index: {}]
  %s1 = inlined_call_operand.vmem [shape: f32[1152,64], index: 1, kind: input, shape index: {}]
  %s2 = inlined_call_operand.vmem [shape: f32[1,64], index: 2, kind: input, shape index: {}]
  %s3 = inlined_call_operand.vmem [shape: f32[16,64], index: 3, kind: input, shape index: {}]
  %s4 = inlined_call_operand.hbm [shape: f32[2,2,2,2,2,64], index: 4, kind: output, shape index: {}]
  %s5 = sld [smem:[#allocation0]]
  $region49: #{tpu_custom_call.1} parent=0
    _
  %s7 = ssub.s32 1, %s5
  %s8 = scalar_select 0, %s7, %s5
  $region1: #{tpu_custom_call.1} parent=0
    #allocation5 [shape = 'u8[16384]{0}', space=vmem, size = 0x4000, scoped, tag = 'output window, operand 0']
    #allocation6 [shape = 's32[2]{0}', space=sflag, size = 0x8, scoped, tag = 'scoped memory for tpu_custom_call.1']
    %9 = vsyncpa [#allocation6], 0
    %s10 = scalar_lea.sflag [#allocation6], 1
    %11 = vsyncpa %s10, 0
    loop: start=0, step=1, limit=4
    $region2: #{tpu_custom_call.1} parent=1 // loop_pre_header
      _
    $region3: #{tpu_custom_call.1} parent=1 // loop_header
      %s13 = sphi 0, %s17
      %p14 = scmp.ge.s32.totalorder %s13, 4
      %s23 = sphi 0, %s25
      %s26 = sphi 0, %s23
      %s27 = sphi 0, %s26
      %s43 = sphi 0, %s27
      %s47 = sphi 0, %s47
      %s49 = sphi 0, %s47
      %s50 = sphi 0, %s49
      %s64 = sphi 0, %s50
      %s68 = sphi 0, %s68
      %s70 = sphi 0, %s68
      %s71 = sphi 0, %s70
      %s85 = sphi 0, %s71
      %s89 = sphi 0, %s89
      %s91 = sphi 0, %s89
      %s92 = sphi 0, %s91
      %s106 = sphi 0, %s92
      %s112 = sphi 0, %s114
      %s115 = sphi 0, %s112
      %s116 = sphi 0, %s115
      %s132 = sphi 0, %s116
    $region4: #{tpu_custom_call.1} parent=1 // loop_header_branch
      %16 = sbr.rel (%p14) target = $region8
    $region5: #{tpu_custom_call.1} parent=1 // loop_body
      %s18 = ssub.s32 %s13, 1
      %s19 = ssub.s32 %s13, 2
      %s20 = sadd.s32 %s13, 1
      %s21 = ssub.s32 %s13, %s20
      %p22 = scmp.eq.s32.totalorder %s21, 0
      %s24 = sadd.s32 %s23, 1
      %s25 = scalar_select %p22, %s23, %s24
      %p28 = pneg %p22
      %p29 = scmp.eq.s32.totalorder %s13, 1
      %p30 = por %p28, %p29
      %p31 = scmp.ne.s32.totalorder %s23, %s26
      %p32 = scmp.eq.s32.totalorder %s13, 0
      %p33 = por %p31, %p32
      %p34 = scmp.ne.s32.totalorder %s23, %s26
      %p35 = scmp.eq.s32.totalorder %s18, 1
      %p36 = por %p34, %p35
      %p37 = scmp.ne.s32.totalorder %s26, %s27
      %p38 = scmp.eq.s32.totalorder %s18, 0
      %p39 = por %p37, %p38
      %p40 = scmp.ne.s32.totalorder %s26, %s27
      %p41 = scmp.eq.s32.totalorder %s19, 1
      %p42 = por %p40, %p41
      %p44 = scmp.ne.s32.totalorder %s27, %s43
      %p45 = scmp.eq.s32.totalorder %s19, 0
      %p46 = por %p44, %p45
      %s48 = sadd.s32 %s47, 1
      %p51 = scmp.eq.s32.totalorder %s13, 1
      %p52 = scmp.ne.s32.totalorder %s47, %s49
      %p53 = scmp.eq.s32.totalorder %s13, 0
      %p54 = por %p52, %p53
      %p55 = scmp.ne.s32.totalorder %s47, %s49
      %p56 = scmp.eq.s32.totalorder %s18, 1
      %p57 = por %p55, %p56
      %p58 = scmp.ne.s32.totalorder %s49, %s50
      %p59 = scmp.eq.s32.totalorder %s18, 0
      %p60 = por %p58, %p59
      %p61 = scmp.ne.s32.totalorder %s49, %s50
      %p62 = scmp.eq.s32.totalorder %s19, 1
      %p63 = por %p61, %p62
      %p65 = scmp.ne.s32.totalorder %s50, %s64
      %p66 = scmp.eq.s32.totalorder %s19, 0
      %p67 = por %p65, %p66
      %s69 = sadd.s32 %s68, 1
      %p72 = scmp.eq.s32.totalorder %s13, 1
      %p73 = scmp.ne.s32.totalorder %s68, %s70
      %p74 = scmp.eq.s32.totalorder %s13, 0
      %p75 = por %p73, %p74
      %p76 = scmp.ne.s32.totalorder %s68, %s70
      %p77 = scmp.eq.s32.totalorder %s18, 1
      %p78 = por %p76, %p77
      %p79 = scmp.ne.s32.totalorder %s70, %s71
      %p80 = scmp.eq.s32.totalorder %s18, 0
      %p81 = por %p79, %p80
      %p82 = scmp.ne.s32.totalorder %s70, %s71
      %p83 = scmp.eq.s32.totalorder %s19, 1
      %p84 = por %p82, %p83
      %p86 = scmp.ne.s32.totalorder %s71, %s85
      %p87 = scmp.eq.s32.totalorder %s19, 0
      %p88 = por %p86, %p87
      %s90 = sadd.s32 %s89, 1
      %p93 = scmp.eq.s32.totalorder %s13, 1
      %p94 = scmp.ne.s32.totalorder %s89, %s91
      %p95 = scmp.eq.s32.totalorder %s13, 0
      %p96 = por %p94, %p95
      %p97 = scmp.ne.s32.totalorder %s89, %s91
      %p98 = scmp.eq.s32.totalorder %s18, 1
      %p99 = por %p97, %p98
      %p100 = scmp.ne.s32.totalorder %s91, %s92
      %p101 = scmp.eq.s32.totalorder %s18, 0
      %p102 = por %p100, %p101
      %p103 = scmp.ne.s32.totalorder %s91, %s92
      %p104 = scmp.eq.s32.totalorder %s19, 1
      %p105 = por %p103, %p104
      %p107 = scmp.ne.s32.totalorder %s92, %s106
      %p108 = scmp.eq.s32.totalorder %s19, 0
      %p109 = por %p107, %p108
      %s110 = ssub.s32 %s13, %s20
      %p111 = scmp.eq.s32.totalorder %s110, 0
      %s113 = sadd.s32 %s112, 1
      %s114 = scalar_select %p111, %s112, %s113
      %p117 = pneg %p111
      %p118 = scmp.eq.s32.totalorder %s13, 1
      %p119 = por %p117, %p118
      %p120 = scmp.ne.s32.totalorder %s112, %s115
      %p121 = scmp.eq.s32.totalorder %s13, 0
      %p122 = por %p120, %p121
      %p123 = scmp.ne.s32.totalorder %s112, %s115
      %p124 = scmp.eq.s32.totalorder %s18, 1
      %p125 = por %p123, %p124
      %p126 = scmp.ne.s32.totalorder %s115, %s116
      %p127 = scmp.eq.s32.totalorder %s18, 0
      %p128 = por %p126, %p127
      %p129 = scmp.ne.s32.totalorder %s115, %s116
      %p130 = scmp.eq.s32.totalorder %s19, 1
      %p131 = por %p129, %p130
      %p133 = scmp.ne.s32.totalorder %s116, %s132
      %p134 = scmp.eq.s32.totalorder %s19, 0
      %p135 = por %p133, %p134
      %p136 = scmp.le.s32.totalorder 1, %s13
      %p137 = scmp.lt.s32.totalorder %s13, 3
      %p138 = pnand %p136, %p137
      %p139 = pneg %p138
      // Predicated region
      $region9: #{tpu_custom_call.1} parent=5 // pred_check
        _
      $region10: #{tpu_custom_call.1} parent=5 // pred_check_branch
        %141 = sbr.rel (%p138) target = $region12
      $region11: #{tpu_custom_call.1} parent=5 // pred_region
        %s142 = ssub.s32 %s13, 1
        // Predicated region
        $region13: #{tpu_custom_call.1} parent=11 // pred_check
          %p143 = pneg %p60
        $region14: #{tpu_custom_call.1} parent=11 // pred_check_branch
          %145 = sbr.rel (%p143) target = $region16
        $region15: #{tpu_custom_call.1} parent=11 // pred_region
          _
        $region16: #{tpu_custom_call.1} parent=11 // pred_fallthru
          _
        // Predicated region
        $region17: #{tpu_custom_call.1} parent=11 // pred_check
          %p146 = pneg %p81
        $region18: #{tpu_custom_call.1} parent=11 // pred_check_branch
          %148 = sbr.rel (%p146) target = $region20
        $region19: #{tpu_custom_call.1} parent=11 // pred_region
          _
        $region20: #{tpu_custom_call.1} parent=11 // pred_fallthru
          _
        // Predicated region
        $region21: #{tpu_custom_call.1} parent=11 // pred_check
          %p149 = pneg %p102
        $region22: #{tpu_custom_call.1} parent=11 // pred_check_branch
          %151 = sbr.rel (%p149) target = $region24
        $region23: #{tpu_custom_call.1} parent=11 // pred_region
          _
        $region24: #{tpu_custom_call.1} parent=11 // pred_fallthru
          _
      $region12: #{tpu_custom_call.1} parent=5 // pred_fallthru
        _
      %p152 = scmp.lt.s32.totalorder %s13, 2
      // Predicated region
      $region25: #{tpu_custom_call.1} parent=5 // pred_check
        %p153 = pneg %p152
      $region26: #{tpu_custom_call.1} parent=5 // pred_check_branch
        %155 = sbr.rel (%p153) target = $region28
      $region27: #{tpu_custom_call.1} parent=5 // pred_region
        // Predicated region
        $region29: #{tpu_custom_call.1} parent=27 // pred_check
          %p156 = pneg %p33
        $region30: #{tpu_custom_call.1} parent=27 // pred_check_branch
          %158 = sbr.rel (%p156) target = $region32
        $region31: #{tpu_custom_call.1} parent=27 // pred_region
          %p159 = scmp.lt.s32.totalorder %s13, 1
          %s160 = scalar_select %p159, %s13, 1
          %s161 = smul.addr %s160, 2
          %s162 = smul.addr %s161, 2
          %s163 = scalar_lea.vmem %s0, %s162
        $region32: #{tpu_custom_call.1} parent=27 // pred_fallthru
          _
      $region28: #{tpu_custom_call.1} parent=5 // pred_fallthru
        _
      %p164 = scmp.le.s32.totalorder 1, %s13
      %p165 = scmp.lt.s32.totalorder %s13, 3
      %p166 = pnand %p164, %p165
      %p167 = pneg %p166
      // Predicated region
      $region33: #{tpu_custom_call.1} parent=5 // pred_check
        _
      $region34: #{tpu_custom_call.1} parent=5 // pred_check_branch
        %169 = sbr.rel (%p166) target = $region36
      $region35: #{tpu_custom_call.1} parent=5 // pred_region
        %s170 = ssub.s32 %s13, 1
        %p171 = scmp.lt.s32.totalorder %s18, 1
        %s172 = scalar_select %p171, %s18, 1
        %s173 = smul.addr %s172, 2
        %s174 = smul.addr %s173, 2
        %s175 = scalar_lea.vmem %s0, %s174
        %p176 = pneg %p39
        %p177 = pneg %p36
        %p178 = pneg %p60
        %p179 = pneg %p57
        %p180 = pneg %p81
        %p181 = pneg %p78
        %p182 = pneg %p102
        %p183 = pneg %p99
        %p184 = pneg %p128
        %p185 = pneg %p125
        %s186 = sand.u32 %s115, 1
        %s187 = scalar_lea.sflag [#allocation6], %s186
        %s188 = sand.u32 %s115, 1
        %s189 = smul.addr %s188, 16
        %s190 = scalar_lea.vmem [#allocation5], %s189
        %p191 = scmp.lt.s32.totalorder %s18, 1
        %s192 = scalar_select %p191, %s18, 1
        %s193 = smul.addr %s192, 2
        %s194 = smul.addr %s193, 2
        %s195 = scalar_lea.vmem %s0, %s194
        %196 = vst [vmem:[#allocation2] sm:$0xf] 0.0
        %197 = vst [vmem:[#allocation2 + $0x4] sm:$0xf] 0.0
        %198 = vst [vmem:[#allocation2 + $0x8] sm:$0xf] 0.0
        %199 = vst [vmem:[#allocation2 + $0xc] sm:$0xf] 0.0
        %v200 = vld [vmem:[%s195] sm:$0x3]
        %v201 = vld [vmem:[%s195 + $0x2] sm:$0x3]
        %s202 = scalar_lea.vmem [#allocation2], 4
        %203 = vst [vmem:[%s202 + $0x1] sm:$0x3] %v200
        %204 = vst [vmem:[%s202 + $0x5] sm:$0x3] %v201
        %v205 = vld [vmem:[#allocation2] sm:$0xf]
        %206 = vst [vmem:[#allocation3] sm:$0x3] %v205
        %v208 = vrot.slane %v205, 5
        %v209 = vrot.slane %v208, 4
        %211 = vst [vmem:[#allocation3 + $0x4] sm:$0x3] %v209
        %v212 = vrot.slane %v205, 6
        %v213 = vrot.slane %v212, 4
        %215 = vst [vmem:[#allocation3 + $0x8] sm:$0x3] %v213
        %v216 = vld [vmem:[%s202] sm:$0xf]
        %217 = vst [vmem:[#allocation3 + $0xc] sm:$0x3] %v216
        %v219 = vrot.slane %v216, 5
        %v220 = vrot.slane %v219, 4
        %222 = vst [vmem:[#allocation3 + $0x10] sm:$0x3] %v220
        %v223 = vrot.slane %v216, 6
        %v224 = vrot.slane %v223, 4
        %226 = vst [vmem:[#allocation3 + $0x14] sm:$0x3] %v224
        %s227 = scalar_lea.vmem [#allocation2], 8
        %v228 = vld [vmem:[%s227] sm:$0xf]
        %229 = vst [vmem:[#allocation3 + $0x18] sm:$0x3] %v228
        %v231 = vrot.slane %v228, 5
        %v232 = vrot.slane %v231, 4
        %234 = vst [vmem:[#allocation3 + $0x1c] sm:$0x3] %v232
        %v235 = vrot.slane %v228, 6
        %v236 = vrot.slane %v235, 4
        %238 = vst [vmem:[#allocation3 + $0x20] sm:$0x3] %v236
        %v239 = vld [vmem:[%s202] sm:$0xf]
        %v241 = vrot.slane %v239, 6
        %243 = vst [vmem:[#allocation3] sm:$0xc] %v241
        %v244 = vrot.slane %v239, 7
        %246 = vst [vmem:[#allocation3 + $0x4] sm:$0xc] %v244
        %247 = vst [vmem:[#allocation3 + $0x8] sm:$0xc] %v239
        %v248 = vld [vmem:[%s227] sm:$0xf]
        %v250 = vrot.slane %v248, 6
        %252 = vst [vmem:[#allocation3 + $0xc] sm:$0xc] %v250
        %v253 = vrot.slane %v248, 7
        %255 = vst [vmem:[#allocation3 + $0x10] sm:$0xc] %v253
        %256 = vst [vmem:[#allocation3 + $0x14] sm:$0xc] %v248
        %s257 = scalar_lea.vmem [#allocation2], 12
        %v258 = vld [vmem:[%s257] sm:$0xf]
        %v260 = vrot.slane %v258, 6
        %262 = vst [vmem:[#allocation3 + $0x18] sm:$0xc] %v260
        %v263 = vrot.slane %v258, 7
        %265 = vst [vmem:[#allocation3 + $0x1c] sm:$0xc] %v263
        %266 = vst [vmem:[#allocation3 + $0x20] sm:$0xc] %v258
        %v267 = vld [vmem:[#allocation3] sm:$0xff]
        %v268 = vld [vmem:[#allocation3 + $0x8] sm:$0xff]
        %v269 = vld [vmem:[#allocation3 + $0x10] sm:$0xff]
        %v270 = vld [vmem:[#allocation3 + $0x18] sm:$0xff]
        %v271 = vld [vmem:[#allocation3 + $0x20] sm:$0xf]
        %v272 = vld [vmem:[%s1] sm:$0xff]
        %v273 = vld [vmem:[%s1 + $0x8] sm:$0xff]
        %v274 = vld [vmem:[%s1 + $0x10] sm:$0xff]
        %v275 = vld [vmem:[%s1 + $0x18] sm:$0xff]
        %v276 = vld [vmem:[%s1 + $0x20] sm:$0xff]
        %v277 = vld [vmem:[%s1 + $0x28] sm:$0xff]
        %v278 = vld [vmem:[%s1 + $0x30] sm:$0xff]
        %v279 = vld [vmem:[%s1 + $0x38] sm:$0xff]
        %v280 = vld [vmem:[%s1 + $0x40] sm:$0xff]
        %v281 = vld [vmem:[%s1 + $0x48] sm:$0xff]
        %v282 = vld [vmem:[%s1 + $0x50] sm:$0xff]
        %v283 = vld [vmem:[%s1 + $0x58] sm:$0xff]
        %v284 = vld [vmem:[%s1 + $0x60] sm:$0xff]
        %v285 = vld [vmem:[%s1 + $0x68] sm:$0xff]
        %v286 = vld [vmem:[%s1 + $0x70] sm:$0xff]
        %v287 = vld [vmem:[%s1 + $0x78] sm:$0xff]
        %v288 = vld [vmem:[%s1 + $0x80] sm:$0xff]
        %v289 = vld [vmem:[%s1 + $0x88] sm:$0xff]
        %v290 = vld [vmem:[%s1 + $0x90] sm:$0xff]
        %v291 = vld [vmem:[%s1 + $0x98] sm:$0xff]
        %v292 = vld [vmem:[%s1 + $0xa0] sm:$0xff]
        %v293 = vld [vmem:[%s1 + $0xa8] sm:$0xff]
        %v294 = vld [vmem:[%s1 + $0xb0] sm:$0xff]
        %v295 = vld [vmem:[%s1 + $0xb8] sm:$0xff]
        %v296 = vld [vmem:[%s1 + $0xc0] sm:$0xff]
        %v297 = vld [vmem:[%s1 + $0xc8] sm:$0xff]
        %v298 = vld [vmem:[%s1 + $0xd0] sm:$0xff]
        %v299 = vld [vmem:[%s1 + $0xd8] sm:$0xff]
        %v300 = vld [vmem:[%s1 + $0xe0] sm:$0xff]
        %v301 = vld [vmem:[%s1 + $0xe8] sm:$0xff]
        %v302 = vld [vmem:[%s1 + $0xf0] sm:$0xff]
        %v303 = vld [vmem:[%s1 + $0xf8] sm:$0xff]
        %v304 = vld [vmem:[%s1 + $0x100] sm:$0xff]
        %v305 = vld [vmem:[%s1 + $0x108] sm:$0xff]
        %v306 = vld [vmem:[%s1 + $0x110] sm:$0xff]
        %v307 = vld [vmem:[%s1 + $0x118] sm:$0xff]
        %v308 = vld [vmem:[%s1 + $0x120] sm:$0xff]
        %v309 = vld [vmem:[%s1 + $0x128] sm:$0xff]
        %v310 = vld [vmem:[%s1 + $0x130] sm:$0xff]
        %v311 = vld [vmem:[%s1 + $0x138] sm:$0xff]
        %v312 = vld [vmem:[%s1 + $0x140] sm:$0xff]
        %v313 = vld [vmem:[%s1 + $0x148] sm:$0xff]
        %v314 = vld [vmem:[%s1 + $0x150] sm:$0xff]
        %v315 = vld [vmem:[%s1 + $0x158] sm:$0xff]
        %v316 = vld [vmem:[%s1 + $0x160] sm:$0xff]
        %v317 = vld [vmem:[%s1 + $0x168] sm:$0xff]
        %v318 = vld [vmem:[%s1 + $0x170] sm:$0xff]
        %v319 = vld [vmem:[%s1 + $0x178] sm:$0xff]
        %v320 = vld [vmem:[%s1 + $0x180] sm:$0xff]
        %v321 = vld [vmem:[%s1 + $0x188] sm:$0xff]
        %v322 = vld [vmem:[%s1 + $0x190] sm:$0xff]
        %v323 = vld [vmem:[%s1 + $0x198] sm:$0xff]
        %v324 = vld [vmem:[%s1 + $0x1a0] sm:$0xff]
        %v325 = vld [vmem:[%s1 + $0x1a8] sm:$0xff]
        %v326 = vld [vmem:[%s1 + $0x1b0] sm:$0xff]
        %v327 = vld [vmem:[%s1 + $0x1b8] sm:$0xff]
        %v328 = vld [vmem:[%s1 + $0x1c0] sm:$0xff]
        %v329 = vld [vmem:[%s1 + $0x1c8] sm:$0xff]
        %v330 = vld [vmem:[%s1 + $0x1d0] sm:$0xff]
        %v331 = vld [vmem:[%s1 + $0x1d8] sm:$0xff]
        %v332 = vld [vmem:[%s1 + $0x1e0] sm:$0xff]
        %v333 = vld [vmem:[%s1 + $0x1e8] sm:$0xff]
        %v334 = vld [vmem:[%s1 + $0x1f0] sm:$0xff]
        %v335 = vld [vmem:[%s1 + $0x1f8] sm:$0xff]
        %v336 = vld [vmem:[%s1 + $0x200] sm:$0xff]
        %v337 = vld [vmem:[%s1 + $0x208] sm:$0xff]
        %v338 = vld [vmem:[%s1 + $0x210] sm:$0xff]
        %v339 = vld [vmem:[%s1 + $0x218] sm:$0xff]
        %v340 = vld [vmem:[%s1 + $0x220] sm:$0xff]
        %v341 = vld [vmem:[%s1 + $0x228] sm:$0xff]
        %v342 = vld [vmem:[%s1 + $0x230] sm:$0xff]
        %v343 = vld [vmem:[%s1 + $0x238] sm:$0xff]
        %v344 = vld [vmem:[%s1 + $0x240] sm:$0xff]
        %v345 = vld [vmem:[%s1 + $0x248] sm:$0xff]
        %v346 = vld [vmem:[%s1 + $0x250] sm:$0xff]
        %v347 = vld [vmem:[%s1 + $0x258] sm:$0xff]
        %v348 = vld [vmem:[%s1 + $0x260] sm:$0xff]
        %v349 = vld [vmem:[%s1 + $0x268] sm:$0xff]
        %v350 = vld [vmem:[%s1 + $0x270] sm:$0xff]
        %v351 = vld [vmem:[%s1 + $0x278] sm:$0xff]
        %v352 = vld [vmem:[%s1 + $0x280] sm:$0xff]
        %v353 = vld [vmem:[%s1 + $0x288] sm:$0xff]
        %v354 = vld [vmem:[%s1 + $0x290] sm:$0xff]
        %v355 = vld [vmem:[%s1 + $0x298] sm:$0xff]
        %v356 = vld [vmem:[%s1 + $0x2a0] sm:$0xff]
        %v357 = vld [vmem:[%s1 + $0x2a8] sm:$0xff]
        %v358 = vld [vmem:[%s1 + $0x2b0] sm:$0xff]
        %v359 = vld [vmem:[%s1 + $0x2b8] sm:$0xff]
        %v360 = vld [vmem:[%s1 + $0x2c0] sm:$0xff]
        %v361 = vld [vmem:[%s1 + $0x2c8] sm:$0xff]
        %v362 = vld [vmem:[%s1 + $0x2d0] sm:$0xff]
        %v363 = vld [vmem:[%s1 + $0x2d8] sm:$0xff]
        %v364 = vld [vmem:[%s1 + $0x2e0] sm:$0xff]
        %v365 = vld [vmem:[%s1 + $0x2e8] sm:$0xff]
        %v366 = vld [vmem:[%s1 + $0x2f0] sm:$0xff]
        %v367 = vld [vmem:[%s1 + $0x2f8] sm:$0xff]
        %v368 = vld [vmem:[%s1 + $0x300] sm:$0xff]
        %v369 = vld [vmem:[%s1 + $0x308] sm:$0xff]
        %v370 = vld [vmem:[%s1 + $0x310] sm:$0xff]
        %v371 = vld [vmem:[%s1 + $0x318] sm:$0xff]
        %v372 = vld [vmem:[%s1 + $0x320] sm:$0xff]
        %v373 = vld [vmem:[%s1 + $0x328] sm:$0xff]
        %v374 = vld [vmem:[%s1 + $0x330] sm:$0xff]
        %v375 = vld [vmem:[%s1 + $0x338] sm:$0xff]
        %v376 = vld [vmem:[%s1 + $0x340] sm:$0xff]
        %v377 = vld [vmem:[%s1 + $0x348] sm:$0xff]
        %v378 = vld [vmem:[%s1 + $0x350] sm:$0xff]
        %v379 = vld [vmem:[%s1 + $0x358] sm:$0xff]
        %v380 = vld [vmem:[%s1 + $0x360] sm:$0xff]
        %v381 = vld [vmem:[%s1 + $0x368] sm:$0xff]
        %v382 = vld [vmem:[%s1 + $0x370] sm:$0xff]
        %v383 = vld [vmem:[%s1 + $0x378] sm:$0xff]
        %v384 = vld [vmem:[%s1 + $0x380] sm:$0xff]
        %v385 = vld [vmem:[%s1 + $0x388] sm:$0xff]
        %v386 = vld [vmem:[%s1 + $0x390] sm:$0xff]
        %v387 = vld [vmem:[%s1 + $0x398] sm:$0xff]
        %v388 = vld [vmem:[%s1 + $0x3a0] sm:$0xff]
        %v389 = vld [vmem:[%s1 + $0x3a8] sm:$0xff]
        %v390 = vld [vmem:[%s1 + $0x3b0] sm:$0xff]
        %v391 = vld [vmem:[%s1 + $0x3b8] sm:$0xff]
        %v392 = vld [vmem:[%s1 + $0x3c0] sm:$0xff]
        %v393 = vld [vmem:[%s1 + $0x3c8] sm:$0xff]
        %v394 = vld [vmem:[%s1 + $0x3d0] sm:$0xff]
        %v395 = vld [vmem:[%s1 + $0x3d8] sm:$0xff]
        %v396 = vld [vmem:[%s1 + $0x3e0] sm:$0xff]
        %v397 = vld [vmem:[%s1 + $0x3e8] sm:$0xff]
        %v398 = vld [vmem:[%s1 + $0x3f0] sm:$0xff]
        %v399 = vld [vmem:[%s1 + $0x3f8] sm:$0xff]
        %v400 = vld [vmem:[%s1 + $0x400] sm:$0xff]
        %v401 = vld [vmem:[%s1 + $0x408] sm:$0xff]
        %v402 = vld [vmem:[%s1 + $0x410] sm:$0xff]
        %v403 = vld [vmem:[%s1 + $0x418] sm:$0xff]
        %v404 = vld [vmem:[%s1 + $0x420] sm:$0xff]
        %v405 = vld [vmem:[%s1 + $0x428] sm:$0xff]
        %v406 = vld [vmem:[%s1 + $0x430] sm:$0xff]
        %v407 = vld [vmem:[%s1 + $0x438] sm:$0xff]
        %v408 = vld [vmem:[%s1 + $0x440] sm:$0xff]
        %v409 = vld [vmem:[%s1 + $0x448] sm:$0xff]
        %v410 = vld [vmem:[%s1 + $0x450] sm:$0xff]
        %v411 = vld [vmem:[%s1 + $0x458] sm:$0xff]
        %v412 = vld [vmem:[%s1 + $0x460] sm:$0xff]
        %v413 = vld [vmem:[%s1 + $0x468] sm:$0xff]
        %v414 = vld [vmem:[%s1 + $0x470] sm:$0xff]
        %v415 = vld [vmem:[%s1 + $0x478] sm:$0xff]
        %v416 = vld [vmem:[%s2] sm:$0x1]
        %v418 = vlaneseq
        %v419 = vshrl.u32 %v418, 7
        %v420 = vsub.s32 0, %v419
        %v421 = vrot.slane %v416, %v420
        %v427 = vcombine.high %v267, %v267
        %v428 = vcombine.high %v268, %v268
        %v429 = vcombine.high %v269, %v269
        %v430 = vcombine.high %v270, %v270
        %435 = vmatprep.subr.mxu0 0.0
        %436 = vmatpush1.msra.mxu0 %v287
        %437 = vmatprep.subr.mxu0 0.0
        %438 = vmatpush1.msra.mxu0 %v286
        %439 = vmatprep.subr.mxu0 0.0
        %440 = vmatpush1.msra.mxu0 %v285
        %441 = vmatprep.subr.mxu0 0.0
        %442 = vmatpush1.msra.mxu0 %v284
        %443 = vmatprep.subr.mxu0 0.0
        %444 = vmatpush1.msra.mxu0 %v283
        %445 = vmatprep.subr.mxu0 0.0
        %446 = vmatpush1.msra.mxu0 %v282
        %447 = vmatprep.subr.mxu0 0.0
        %448 = vmatpush1.msra.mxu0 %v281
        %449 = vmatprep.subr.mxu0 0.0
        %450 = vmatpush1.msra.mxu0 %v280
        %451 = vmatprep.subr.mxu0 0.0
        %452 = vmatpush1.msra.mxu0 %v279
        %453 = vmatprep.subr.mxu0 0.0
        %454 = vmatpush1.msra.mxu0 %v278
        %455 = vmatprep.subr.mxu0 0.0
        %456 = vmatpush1.msra.mxu0 %v277
        %457 = vmatprep.subr.mxu0 0.0
        %458 = vmatpush1.msra.mxu0 %v276
        %459 = vmatprep.subr.mxu0 0.0
        %460 = vmatpush1.msra.mxu0 %v275
        %461 = vmatprep.subr.mxu0 0.0
        %462 = vmatpush1.msra.mxu0 %v274
        %463 = vmatprep.subr.mxu0 0.0
        %464 = vmatpush1.msra.mxu0 %v273
        %465 = vmatprep.subr.mxu0 0.0
        %466 = vmatpush1.msra.mxu0 %v272
        %467 = vmatprep.subr.mxu0 0.0
        %468 = vmatpush2.msra.mxu0 %v303
        %469 = vmatprep.subr.mxu0 0.0
        %470 = vmatpush2.msra.mxu0 %v302
        %471 = vmatprep.subr.mxu0 0.0
        %472 = vmatpush2.msra.mxu0 %v301
        %473 = vmatprep.subr.mxu0 0.0
        %474 = vmatpush2.msra.mxu0 %v300
        %475 = vmatprep.subr.mxu0 0.0
        %476 = vmatpush2.msra.mxu0 %v299
        %477 = vmatprep.subr.mxu0 0.0
        %478 = vmatpush2.msra.mxu0 %v298
        %479 = vmatprep.subr.mxu0 0.0
        %480 = vmatpush2.msra.mxu0 %v297
        %481 = vmatprep.subr.mxu0 0.0
        %482 = vmatpush2.msra.mxu0 %v296
        %483 = vmatprep.subr.mxu0 0.0
        %484 = vmatpush2.msra.mxu0 %v295
        %485 = vmatprep.subr.mxu0 0.0
        %486 = vmatpush2.msra.mxu0 %v294
        %487 = vmatprep.subr.mxu0 0.0
        %488 = vmatpush2.msra.mxu0 %v293
        %489 = vmatprep.subr.mxu0 0.0
        %490 = vmatpush2.msra.mxu0 %v292
        %491 = vmatprep.subr.mxu0 0.0
        %492 = vmatpush2.msra.mxu0 %v291
        %493 = vmatprep.subr.mxu0 0.0
        %494 = vmatpush2.msra.mxu0 %v290
        %495 = vmatprep.subr.mxu0 0.0
        %496 = vmatpush2.msra.mxu0 %v289
        %497 = vmatprep.subr.mxu0 0.0
        %498 = vmatpush2.msra.mxu0 %v288
        %499 = vmatprep.mubr.f32.mxu0 %v427
        %500 = vmatmul.mubr.f32.gmra.mxu0 %v267
        %v501 = vpop.f32.mrf.mxu0
        %v502 = vadd.f32 %v421, %v501
        %v503 = vpop.f32.mrf.mxu0
        %504 = vdwg.mxu0
        %505 = vmatprep.subr.mxu0 0.0
        %506 = vmatpush1.msra.mxu0 %v319
        %507 = vmatprep.subr.mxu0 0.0
        %508 = vmatpush1.msra.mxu0 %v318
        %509 = vmatprep.subr.mxu0 0.0
        %510 = vmatpush1.msra.mxu0 %v317
        %511 = vmatprep.subr.mxu0 0.0
        %512 = vmatpush1.msra.mxu0 %v316
        %513 = vmatprep.subr.mxu0 0.0
        %514 = vmatpush1.msra.mxu0 %v315
        %515 = vmatprep.subr.mxu0 0.0
        %516 = vmatpush1.msra.mxu0 %v314
        %517 = vmatprep.subr.mxu0 0.0
        %518 = vmatpush1.msra.mxu0 %v313
        %519 = vmatprep.subr.mxu0 0.0
        %520 = vmatpush1.msra.mxu0 %v312
        %521 = vmatprep.subr.mxu0 0.0
        %522 = vmatpush1.msra.mxu0 %v311
        %523 = vmatprep.subr.mxu0 0.0
        %524 = vmatpush1.msra.mxu0 %v310
        %525 = vmatprep.subr.mxu0 0.0
        %526 = vmatpush1.msra.mxu0 %v309
        %527 = vmatprep.subr.mxu0 0.0
        %528 = vmatpush1.msra.mxu0 %v308
        %529 = vmatprep.subr.mxu0 0.0
        %530 = vmatpush1.msra.mxu0 %v307
        %531 = vmatprep.subr.mxu0 0.0
        %532 = vmatpush1.msra.mxu0 %v306
        %533 = vmatprep.subr.mxu0 0.0
        %534 = vmatpush1.msra.mxu0 %v305
        %535 = vmatprep.subr.mxu0 0.0
        %536 = vmatpush1.msra.mxu0 %v304
        %537 = vmatprep.subr.mxu0 0.0
        %538 = vmatpush2.msra.mxu0 %v335
        %539 = vmatprep.subr.mxu0 0.0
        %540 = vmatpush2.msra.mxu0 %v334
        %541 = vmatprep.subr.mxu0 0.0
        %542 = vmatpush2.msra.mxu0 %v333
        %543 = vmatprep.subr.mxu0 0.0
        %544 = vmatpush2.msra.mxu0 %v332
        %545 = vmatprep.subr.mxu0 0.0
        %546 = vmatpush2.msra.mxu0 %v331
        %547 = vmatprep.subr.mxu0 0.0
        %548 = vmatpush2.msra.mxu0 %v330
        %549 = vmatprep.subr.mxu0 0.0
        %550 = vmatpush2.msra.mxu0 %v329
        %551 = vmatprep.subr.mxu0 0.0
        %552 = vmatpush2.msra.mxu0 %v328
        %553 = vmatprep.subr.mxu0 0.0
        %554 = vmatpush2.msra.mxu0 %v327
        %555 = vmatprep.subr.mxu0 0.0
        %556 = vmatpush2.msra.mxu0 %v326
        %557 = vmatprep.subr.mxu0 0.0
        %558 = vmatpush2.msra.mxu0 %v325
        %559 = vmatprep.subr.mxu0 0.0
        %560 = vmatpush2.msra.mxu0 %v324
        %561 = vmatprep.subr.mxu0 0.0
        %562 = vmatpush2.msra.mxu0 %v323
        %563 = vmatprep.subr.mxu0 0.0
        %564 = vmatpush2.msra.mxu0 %v322
        %565 = vmatprep.subr.mxu0 0.0
        %566 = vmatpush2.msra.mxu0 %v321
        %567 = vmatprep.subr.mxu0 0.0
        %568 = vmatpush2.msra.mxu0 %v320
        %569 = vmatprep.mubr.f32.mxu0 %v428
        %570 = vmatmul.mubr.f32.gmra.mxu0 %v268
        %v571 = vpop.f32.mrf.mxu0
        %v572 = vadd.f32 %v502, %v571
        %v573 = vpop.f32.mrf.mxu0
        %574 = vdwg.mxu0
        %575 = vmatprep.subr.mxu0 0.0
        %576 = vmatpush1.msra.mxu0 %v351
        %577 = vmatprep.subr.mxu0 0.0
        %578 = vmatpush1.msra.mxu0 %v350
        %579 = vmatprep.subr.mxu0 0.0
        %580 = vmatpush1.msra.mxu0 %v349
        %581 = vmatprep.subr.mxu0 0.0
        %582 = vmatpush1.msra.mxu0 %v348
        %583 = vmatprep.subr.mxu0 0.0
        %584 = vmatpush1.msra.mxu0 %v347
        %585 = vmatprep.subr.mxu0 0.0
        %586 = vmatpush1.msra.mxu0 %v346
        %587 = vmatprep.subr.mxu0 0.0
        %588 = vmatpush1.msra.mxu0 %v345
        %589 = vmatprep.subr.mxu0 0.0
        %590 = vmatpush1.msra.mxu0 %v344
        %591 = vmatprep.subr.mxu0 0.0
        %592 = vmatpush1.msra.mxu0 %v343
        %593 = vmatprep.subr.mxu0 0.0
        %594 = vmatpush1.msra.mxu0 %v342
        %595 = vmatprep.subr.mxu0 0.0
        %596 = vmatpush1.msra.mxu0 %v341
        %597 = vmatprep.subr.mxu0 0.0
        %598 = vmatpush1.msra.mxu0 %v340
        %599 = vmatprep.subr.mxu0 0.0
        %600 = vmatpush1.msra.mxu0 %v339
        %601 = vmatprep.subr.mxu0 0.0
        %602 = vmatpush1.msra.mxu0 %v338
        %603 = vmatprep.subr.mxu0 0.0
        %604 = vmatpush1.msra.mxu0 %v337
        %605 = vmatprep.subr.mxu0 0.0
        %606 = vmatpush1.msra.mxu0 %v336
        %607 = vmatprep.subr.mxu0 0.0
        %608 = vmatpush2.msra.mxu0 %v367
        %609 = vmatprep.subr.mxu0 0.0
        %610 = vmatpush2.msra.mxu0 %v366
        %611 = vmatprep.subr.mxu0 0.0
        %612 = vmatpush2.msra.mxu0 %v365
        %613 = vmatprep.subr.mxu0 0.0
        %614 = vmatpush2.msra.mxu0 %v364
        %615 = vmatprep.subr.mxu0 0.0
        %616 = vmatpush2.msra.mxu0 %v363
        %617 = vmatprep.subr.mxu0 0.0
        %618 = vmatpush2.msra.mxu0 %v362
        %619 = vmatprep.subr.mxu0 0.0
        %620 = vmatpush2.msra.mxu0 %v361
        %621 = vmatprep.subr.mxu0 0.0
        %622 = vmatpush2.msra.mxu0 %v360
        %623 = vmatprep.subr.mxu0 0.0
        %624 = vmatpush2.msra.mxu0 %v359
        %625 = vmatprep.subr.mxu0 0.0
        %626 = vmatpush2.msra.mxu0 %v358
        %627 = vmatprep.subr.mxu0 0.0
        %628 = vmatpush2.msra.mxu0 %v357
        %629 = vmatprep.subr.mxu0 0.0
        %630 = vmatpush2.msra.mxu0 %v356
        %631 = vmatprep.subr.mxu0 0.0
        %632 = vmatpush2.msra.mxu0 %v355
        %633 = vmatprep.subr.mxu0 0.0
        %634 = vmatpush2.msra.mxu0 %v354
        %635 = vmatprep.subr.mxu0 0.0
        %636 = vmatpush2.msra.mxu0 %v353
        %637 = vmatprep.subr.mxu0 0.0
        %638 = vmatpush2.msra.mxu0 %v352
        %639 = vmatprep.mubr.f32.mxu0 %v429
        %640 = vmatmul.mubr.f32.gmra.mxu0 %v269
        %v641 = vpop.f32.mrf.mxu0
        %v642 = vadd.f32 %v572, %v641
        %v643 = vpop.f32.mrf.mxu0
        %644 = vdwg.mxu0
        %645 = vmatprep.subr.mxu0 0.0
        %646 = vmatpush1.msra.mxu0 %v383
        %647 = vmatprep.subr.mxu0 0.0
        %648 = vmatpush1.msra.mxu0 %v382
        %649 = vmatprep.subr.mxu0 0.0
        %650 = vmatpush1.msra.mxu0 %v381
        %651 = vmatprep.subr.mxu0 0.0
        %652 = vmatpush1.msra.mxu0 %v380
        %653 = vmatprep.subr.mxu0 0.0
        %654 = vmatpush1.msra.mxu0 %v379
        %655 = vmatprep.subr.mxu0 0.0
        %656 = vmatpush1.msra.mxu0 %v378
        %657 = vmatprep.subr.mxu0 0.0
        %658 = vmatpush1.msra.mxu0 %v377
        %659 = vmatprep.subr.mxu0 0.0
        %660 = vmatpush1.msra.mxu0 %v376
        %661 = vmatprep.subr.mxu0 0.0
        %662 = vmatpush1.msra.mxu0 %v375
        %663 = vmatprep.subr.mxu0 0.0
        %664 = vmatpush1.msra.mxu0 %v374
        %665 = vmatprep.subr.mxu0 0.0
        %666 = vmatpush1.msra.mxu0 %v373
        %667 = vmatprep.subr.mxu0 0.0
        %668 = vmatpush1.msra.mxu0 %v372
        %669 = vmatprep.subr.mxu0 0.0
        %670 = vmatpush1.msra.mxu0 %v371
        %671 = vmatprep.subr.mxu0 0.0
        %672 = vmatpush1.msra.mxu0 %v370
        %673 = vmatprep.subr.mxu0 0.0
        %674 = vmatpush1.msra.mxu0 %v369
        %675 = vmatprep.subr.mxu0 0.0
        %676 = vmatpush1.msra.mxu0 %v368
        %677 = vmatprep.subr.mxu0 0.0
        %678 = vmatpush2.msra.mxu0 %v399
        %679 = vmatprep.subr.mxu0 0.0
        %680 = vmatpush2.msra.mxu0 %v398
        %681 = vmatprep.subr.mxu0 0.0
        %682 = vmatpush2.msra.mxu0 %v397
        %683 = vmatprep.subr.mxu0 0.0
        %684 = vmatpush2.msra.mxu0 %v396
        %685 = vmatprep.subr.mxu0 0.0
        %686 = vmatpush2.msra.mxu0 %v395
        %687 = vmatprep.subr.mxu0 0.0
        %688 = vmatpush2.msra.mxu0 %v394
        %689 = vmatprep.subr.mxu0 0.0
        %690 = vmatpush2.msra.mxu0 %v393
        %691 = vmatprep.subr.mxu0 0.0
        %692 = vmatpush2.msra.mxu0 %v392
        %693 = vmatprep.subr.mxu0 0.0
        %694 = vmatpush2.msra.mxu0 %v391
        %695 = vmatprep.subr.mxu0 0.0
        %696 = vmatpush2.msra.mxu0 %v390
        %697 = vmatprep.subr.mxu0 0.0
        %698 = vmatpush2.msra.mxu0 %v389
        %699 = vmatprep.subr.mxu0 0.0
        %700 = vmatpush2.msra.mxu0 %v388
        %701 = vmatprep.subr.mxu0 0.0
        %702 = vmatpush2.msra.mxu0 %v387
        %703 = vmatprep.subr.mxu0 0.0
        %704 = vmatpush2.msra.mxu0 %v386
        %705 = vmatprep.subr.mxu0 0.0
        %706 = vmatpush2.msra.mxu0 %v385
        %707 = vmatprep.subr.mxu0 0.0
        %708 = vmatpush2.msra.mxu0 %v384
        %709 = vmatprep.mubr.f32.mxu0 %v430
        %710 = vmatmul.mubr.f32.gmra.mxu0 %v270
        %v711 = vpop.f32.mrf.mxu0
        %v712 = vadd.f32 %v642, %v711
        %v713 = vpop.f32.mrf.mxu0
        %714 = vdwg.mxu0
        %715 = vmatprep.subr.mxu0 0.0
        %716 = vmatpush1.msra.mxu0 %v415
        %717 = vmatprep.subr.mxu0 0.0
        %718 = vmatpush1.msra.mxu0 %v414
        %719 = vmatprep.subr.mxu0 0.0
        %720 = vmatpush1.msra.mxu0 %v413
        %721 = vmatprep.subr.mxu0 0.0
        %722 = vmatpush1.msra.mxu0 %v412
        %723 = vmatprep.subr.mxu0 0.0
        %724 = vmatpush1.msra.mxu0 %v411
        %725 = vmatprep.subr.mxu0 0.0
        %726 = vmatpush1.msra.mxu0 %v410
        %727 = vmatprep.subr.mxu0 0.0
        %728 = vmatpush1.msra.mxu0 %v409
        %729 = vmatprep.subr.mxu0 0.0
        %730 = vmatpush1.msra.mxu0 %v408
        %731 = vmatprep.subr.mxu0 0.0
        %732 = vmatpush1.msra.mxu0 %v407
        %733 = vmatprep.subr.mxu0 0.0
        %734 = vmatpush1.msra.mxu0 %v406
        %735 = vmatprep.subr.mxu0 0.0
        %736 = vmatpush1.msra.mxu0 %v405
        %737 = vmatprep.subr.mxu0 0.0
        %738 = vmatpush1.msra.mxu0 %v404
        %739 = vmatprep.subr.mxu0 0.0
        %740 = vmatpush1.msra.mxu0 %v403
        %741 = vmatprep.subr.mxu0 0.0
        %742 = vmatpush1.msra.mxu0 %v402
        %743 = vmatprep.subr.mxu0 0.0
        %744 = vmatpush1.msra.mxu0 %v401
        %745 = vmatprep.subr.mxu0 0.0
        %746 = vmatpush1.msra.mxu0 %v400
        %747 = vmatprep.subr.mxu0 0.0
        %748 = vmatpush2.msra.mxu0 0.0
        %749 = vmatprep.subr.mxu0 0.0
        %750 = vmatpush2.msra.mxu0 0.0
        %751 = vmatprep.subr.mxu0 0.0
        %752 = vmatpush2.msra.mxu0 0.0
        %753 = vmatprep.subr.mxu0 0.0
        %754 = vmatpush2.msra.mxu0 0.0
        %755 = vmatprep.subr.mxu0 0.0
        %756 = vmatpush2.msra.mxu0 0.0
        %757 = vmatprep.subr.mxu0 0.0
        %758 = vmatpush2.msra.mxu0 0.0
        %759 = vmatprep.subr.mxu0 0.0
        %760 = vmatpush2.msra.mxu0 0.0
        %761 = vmatprep.subr.mxu0 0.0
        %762 = vmatpush2.msra.mxu0 0.0
        %763 = vmatprep.subr.mxu0 0.0
        %764 = vmatpush2.msra.mxu0 0.0
        %765 = vmatprep.subr.mxu0 0.0
        %766 = vmatpush2.msra.mxu0 0.0
        %767 = vmatprep.subr.mxu0 0.0
        %768 = vmatpush2.msra.mxu0 0.0
        %769 = vmatprep.subr.mxu0 0.0
        %770 = vmatpush2.msra.mxu0 0.0
        %771 = vmatprep.subr.mxu0 0.0
        %772 = vmatpush2.msra.mxu0 0.0
        %773 = vmatprep.subr.mxu0 0.0
        %774 = vmatpush2.msra.mxu0 0.0
        %775 = vmatprep.subr.mxu0 0.0
        %776 = vmatpush2.msra.mxu0 0.0
        %777 = vmatprep.subr.mxu0 0.0
        %778 = vmatpush2.msra.mxu0 0.0
        %779 = vmatprep.mubr.f32.mxu0 0.0
        %780 = vmatmul.mubr.f32.gmra.mxu0 %v271
        %v781 = vpop.f32.mrf.mxu0
        %v782 = vadd.f32 %v712, %v781
        %v783 = vpop.f32.mrf.mxu0
        %784 = vdwg.mxu0
        %v785 = vmax.f32 %v782, 0.0
        %vm786 = vcmask 519168
        %787 = vst.msk [vmem:[#allocation4] sm:$0xf] %vm786, 0.0
        %788 = vst.msk [vmem:[#allocation4 + $0x4] sm:$0xf] %vm786, 0.0
        %789 = vst.msk [vmem:[#allocation4 + $0x8] sm:$0xf] %vm786, 0.0
        %790 = vst.msk [vmem:[#allocation4 + $0xc] sm:$0xf] %vm786, 0.0
        %s791 = scalar_lea.vmem [#allocation4], 4
        %vm792 = vcmask 517120
        %793 = vst.msk [vmem:[%s791 + $0x1] sm:$0x3] %vm792, %v785
        %s794 = scalar_lea.vmem [#allocation4], 8
        %vm795 = vcmask 519170
        %796 = vst.msk [vmem:[%s794 - $0x1] sm:$0xc] %vm795, %v785
        %v797 = vld [vmem:[#allocation4] sm:$0x3]
        %v798 = vld [vmem:[#allocation4 + $0x4] sm:$0x3]
        %v799 = vld [vmem:[#allocation4 + $0x1] sm:$0x3]
        %v800 = vld [vmem:[#allocation4 + $0x5] sm:$0x3]
        %v801 = vld [vmem:[#allocation4 + $0x2] sm:$0x3]
        %v802 = vld [vmem:[#allocation4 + $0x6] sm:$0x3]
        %v803 = vld [vmem:[%s791] sm:$0x3]
        %v804 = vld [vmem:[%s791 + $0x4] sm:$0x3]
        %v805 = vld [vmem:[%s791 + $0x1] sm:$0x3]
        %v806 = vld [vmem:[%s791 + $0x5] sm:$0x3]
        %v807 = vld [vmem:[%s791 + $0x2] sm:$0x3]
        %v808 = vld [vmem:[%s791 + $0x6] sm:$0x3]
        %v809 = vld [vmem:[%s794] sm:$0x3]
        %v810 = vld [vmem:[%s794 + $0x4] sm:$0x3]
        %v811 = vld [vmem:[%s794 + $0x1] sm:$0x3]
        %v812 = vld [vmem:[%s794 + $0x5] sm:$0x3]
        %v813 = vld [vmem:[%s794 + $0x2] sm:$0x3]
        %v814 = vld [vmem:[%s794 + $0x6] sm:$0x3]
        %v815 = vld [vmem:[%s3] sm:$0x1]
        %v816 = vlaneseq
        %v817 = vshrl.u32 %v816, 7
        %v818 = vsub.s32 0, %v817
        %v819 = vrot.slane %v815, %v818
        %v820 = vmul.f32 %v819, %v805
        %v821 = vmul.f32 %v819, %v806
        %v822 = vld [vmem:[%s3 + $0x1] sm:$0x1]
        %v823 = vlaneseq
        %v824 = vshrl.u32 %v823, 7
        %v825 = vsub.s32 0, %v824
        %v826 = vrot.slane %v822, %v825
        %v827 = vmul.f32 %v826, %v803
        %v828 = vmul.f32 %v826, %v804
        %v829 = vadd.f32 %v820, %v827
        %v830 = vadd.f32 %v821, %v828
        %v831 = vld [vmem:[%s3 + $0x2] sm:$0x1]
        %v832 = vlaneseq
        %v833 = vshrl.u32 %v832, 7
        %v834 = vsub.s32 0, %v833
        %v835 = vrot.slane %v831, %v834
        %v836 = vmul.f32 %v835, %v799
        %v837 = vmul.f32 %v835, %v800
        %v838 = vadd.f32 %v829, %v836
        %v839 = vadd.f32 %v830, %v837
        %v840 = vld [vmem:[%s3 + $0x3] sm:$0x1]
        %v841 = vlaneseq
        %v842 = vshrl.u32 %v841, 7
        %v843 = vsub.s32 0, %v842
        %v844 = vrot.slane %v840, %v843
        %v845 = vmul.f32 %v844, %v797
        %v846 = vmul.f32 %v844, %v798
        %v847 = vadd.f32 %v838, %v845
        %v848 = vadd.f32 %v839, %v846
        %849 = vst.msk [vmem:[%s190] sm:$0x3] %vm792, %v847
        %850 = vst.msk [vmem:[%s190 + $0x2] sm:$0x3] %vm792, %v848
        %v851 = vld [vmem:[%s3 + $0x4] sm:$0x1]
        %v852 = vlaneseq
        %v853 = vshrl.u32 %v852, 7
        %v854 = vsub.s32 0, %v853
        %v855 = vrot.slane %v851, %v854
        %v856 = vmul.f32 %v855, %v805
        %v857 = vmul.f32 %v855, %v806
        %v858 = vld [vmem:[%s3 + $0x5] sm:$0x1]
        %v859 = vlaneseq
        %v860 = vshrl.u32 %v859, 7
        %v861 = vsub.s32 0, %v860
        %v862 = vrot.slane %v858, %v861
        %v863 = vmul.f32 %v862, %v807
        %v864 = vmul.f32 %v862, %v808
        %v865 = vadd.f32 %v856, %v863
        %v866 = vadd.f32 %v857, %v864
        %v867 = vld [vmem:[%s3 + $0x6] sm:$0x1]
        %v868 = vlaneseq
        %v869 = vshrl.u32 %v868, 7
        %v870 = vsub.s32 0, %v869
        %v871 = vrot.slane %v867, %v870
        %v872 = vmul.f32 %v871, %v799
        %v873 = vmul.f32 %v871, %v800
        %v874 = vadd.f32 %v865, %v872
        %v875 = vadd.f32 %v866, %v873
        %v876 = vld [vmem:[%s3 + $0x7] sm:$0x1]
        %v877 = vlaneseq
        %v878 = vshrl.u32 %v877, 7
        %v879 = vsub.s32 0, %v878
        %v880 = vrot.slane %v876, %v879
        %v881 = vmul.f32 %v880, %v801
        %v882 = vmul.f32 %v880, %v802
        %v883 = vadd.f32 %v874, %v881
        %v884 = vadd.f32 %v875, %v882
        %s885 = scalar_lea.vmem %s190, 4 [#allocation5]
        %886 = vst.msk [vmem:[%s885] sm:$0x3] %vm792, %v883
        %887 = vst.msk [vmem:[%s885 + $0x2] sm:$0x3] %vm792, %v884
        %v888 = vld [vmem:[%s3 + $0x8] sm:$0x1]
        %v889 = vlaneseq
        %v890 = vshrl.u32 %v889, 7
        %v891 = vsub.s32 0, %v890
        %v892 = vrot.slane %v888, %v891
        %v893 = vmul.f32 %v892, %v805
        %v894 = vmul.f32 %v892, %v806
        %v895 = vld [vmem:[%s3 + $0x9] sm:$0x1]
        %v896 = vlaneseq
        %v897 = vshrl.u32 %v896, 7
        %v898 = vsub.s32 0, %v897
        %v899 = vrot.slane %v895, %v898
        %v900 = vmul.f32 %v899, %v803
        %v901 = vmul.f32 %v899, %v804
        %v902 = vadd.f32 %v893, %v900
        %v903 = vadd.f32 %v894, %v901
        %v904 = vld [vmem:[%s3 + $0xa] sm:$0x1]
        %v905 = vlaneseq
        %v906 = vshrl.u32 %v905, 7
        %v907 = vsub.s32 0, %v906
        %v908 = vrot.slane %v904, %v907
        %v909 = vmul.f32 %v908, %v811
        %v910 = vmul.f32 %v908, %v812
        %v911 = vadd.f32 %v902, %v909
        %v912 = vadd.f32 %v903, %v910
        %v913 = vld [vmem:[%s3 + $0xb] sm:$0x1]
        %v914 = vlaneseq
        %v915 = vshrl.u32 %v914, 7
        %v916 = vsub.s32 0, %v915
        %v917 = vrot.slane %v913, %v916
        %v918 = vmul.f32 %v917, %v809
        %v919 = vmul.f32 %v917, %v810
        %v920 = vadd.f32 %v911, %v918
        %v921 = vadd.f32 %v912, %v919
        %s922 = scalar_lea.vmem %s190, 8 [#allocation5]
        %923 = vst.msk [vmem:[%s922] sm:$0x3] %vm792, %v920
        %924 = vst.msk [vmem:[%s922 + $0x2] sm:$0x3] %vm792, %v921
        %v925 = vld [vmem:[%s3 + $0xc] sm:$0x1]
        %v926 = vlaneseq
        %v927 = vshrl.u32 %v926, 7
        %v928 = vsub.s32 0, %v927
        %v929 = vrot.slane %v925, %v928
        %v930 = vmul.f32 %v929, %v805
        %v931 = vmul.f32 %v929, %v806
        %v932 = vld [vmem:[%s3 + $0xd] sm:$0x1]
        %v933 = vlaneseq
        %v934 = vshrl.u32 %v933, 7
        %v935 = vsub.s32 0, %v934
        %v936 = vrot.slane %v932, %v935
        %v937 = vmul.f32 %v936, %v807
        %v938 = vmul.f32 %v936, %v808
        %v939 = vadd.f32 %v930, %v937
        %v940 = vadd.f32 %v931, %v938
        %v941 = vld [vmem:[%s3 + $0xe] sm:$0x1]
        %v942 = vlaneseq
        %v943 = vshrl.u32 %v942, 7
        %v944 = vsub.s32 0, %v943
        %v945 = vrot.slane %v941, %v944
        %v946 = vmul.f32 %v945, %v811
        %v947 = vmul.f32 %v945, %v812
        %v948 = vadd.f32 %v939, %v946
        %v949 = vadd.f32 %v940, %v947
        %v950 = vld [vmem:[%s3 + $0xf] sm:$0x1]
        %v951 = vlaneseq
        %v952 = vshrl.u32 %v951, 7
        %v953 = vsub.s32 0, %v952
        %v954 = vrot.slane %v950, %v953
        %v955 = vmul.f32 %v954, %v813
        %v956 = vmul.f32 %v954, %v814
        %v957 = vadd.f32 %v948, %v955
        %v958 = vadd.f32 %v949, %v956
        %s959 = scalar_lea.vmem %s190, 12 [#allocation5]
        %960 = vst.msk [vmem:[%s959] sm:$0x3] %vm792, %v957
        %961 = vst.msk [vmem:[%s959 + $0x2] sm:$0x3] %vm792, %v958
        %s962 = sand.u32 %s115, 1
        %s963 = scalar_lea.sflag [#allocation6], %s962
        %s964 = sand.u32 %s115, 1
        %s965 = smul.addr %s964, 16
        %s966 = scalar_lea.vmem [#allocation5], %s965
        // Predicated region
        $region37: #{tpu_custom_call.1} parent=35 // pred_check
          %p967 = pneg %p125
        $region38: #{tpu_custom_call.1} parent=35 // pred_check_branch
          %969 = sbr.rel (%p967) target = $region40
        $region39: #{tpu_custom_call.1} parent=35 // pred_region
          %s971 = ssub.s32 256, 256
          %972 = vsyncadd %s963, %s971
          %s973 = smul.addr %s18, 8
          %s974 = smul.addr %s973, 32
          %s975 = scalar_lea.hbm %s4, %s974
          %s976 = sshll.u32 %s966, 4
          %s977 = int_to_ptr.vmem [resolvable:$true] %s976
          %982 = dma.vmem_to_hbm [thread:$0]  %s977, 256, %s975, %s963, 32, 32, 2
        $region40: #{tpu_custom_call.1} parent=35 // pred_fallthru
          _
      $region36: #{tpu_custom_call.1} parent=5 // pred_fallthru
        _
      %p983 = scmp.le.s32.totalorder 2, %s13
      // Predicated region
      $region41: #{tpu_custom_call.1} parent=5 // pred_check
        %p984 = pneg %p983
      $region42: #{tpu_custom_call.1} parent=5 // pred_check_branch
        %986 = sbr.rel (%p984) target = $region44
      $region43: #{tpu_custom_call.1} parent=5 // pred_region
        %s987 = ssub.s32 %s13, 2
        // Predicated region
        $region45: #{tpu_custom_call.1} parent=43 // pred_check
          %p988 = pneg %p131
        $region46: #{tpu_custom_call.1} parent=43 // pred_check_branch
          %990 = sbr.rel (%p988) target = $region48
        $region47: #{tpu_custom_call.1} parent=43 // pred_region
          %s991 = sand.u32 %s116, 1
          %s992 = scalar_lea.sflag [#allocation6], %s991
          %s993 = sand.u32 %s116, 1
          %s994 = smul.addr %s993, 16
          %s995 = scalar_lea.vmem [#allocation5], %s994
          %996 = dma.done %s992, 256
        $region48: #{tpu_custom_call.1} parent=43 // pred_fallthru
          _
      $region44: #{tpu_custom_call.1} parent=5 // pred_fallthru
        _
    $region6: #{tpu_custom_call.1} parent=1 // loop_footer
      %s17 = sadd.s32 1, %s13
    $region7: #{tpu_custom_call.1} parent=1 // loop_footer_branch
      %12 = sbr.rel target = $region3
    $region8: #{tpu_custom_call.1} parent=1 // loop_exit
      _
    %997 = vsyncpa [#allocation6], 1
    %s998 = scalar_lea.sflag [#allocation6], 1
    %999 = vsyncpa %s998, 1

</llo_original>
